<compile_context>
chip_gen: v5e
topology: v5e:2x2
jax: 0.10.0
libtpu: 0.0.40
codegen_flags: <defaults>
</compile_context>

<pallas_src>
import math

import jax
import jax.numpy as jnp
from jax import lax
from jax.experimental import pallas as pl
from jax.experimental.pallas import tpu as pltpu

NUM_HEADS = 8
LN_EPS = 1e-5
COMPUTE_DTYPE = jnp.bfloat16   # matmul operand dtype (accumulation stays f32)


# --------------------------------------------------------------------------
# Pallas kernel: one (batch, query-tile) step of the full decoder layer
# --------------------------------------------------------------------------
def _decoder_layer_kernel(
    emb_q_ref, emb_kv_ref, posq_ref, poskv_ref, dist_ref,
    wq_ref, bq_ref, wk_ref, bk_ref, wv_ref, bv_ref, wo_ref, bo_ref,
    wtau_ref, btau_ref,
    g1_ref, beta1_ref, w1_ref, bf1_ref, w2_ref, bf2_ref, g2_ref, beta2_ref,
    out_ref,
    attn_scratch, k_scratch, v_scratch,
):
    f32 = jnp.float32
    cdt = COMPUTE_DTYPE
    t = pl.program_id(1)

    # --- K / V projections: once per batch element, cached across query tiles ---
    @pl.when(t == 0)
    def _compute_kv():
        src_kv = emb_kv_ref[0]                                   # [Q, C] f32
        k_in = (src_kv + poskv_ref[0]).astype(cdt)
        v_in = src_kv.astype(cdt)
        k = jnp.dot(k_in, wk_ref[...], preferred_element_type=f32) + bk_ref[...]
        v = jnp.dot(v_in, wv_ref[...], preferred_element_type=f32) + bv_ref[...]
        k_scratch[...] = k.astype(cdt)                           # [Q, C] bf16
        v_scratch[...] = v.astype(cdt)                           # [Q, C] bf16

    src_q = emb_q_ref[0]                   # [TQ, C] f32 (query rows of this tile)
    q_in = (src_q + posq_ref[0]).astype(cdt)
    dist = dist_ref[0]                     # [TQ, Q] f32

    TQ, C = src_q.shape
    D = C // NUM_HEADS
    scale = 1.0 / math.sqrt(D)

    # gen_tau: tiny [TQ, C] x [C, H] matmul; keep f32 (negligible cost, exact mask).
    tau = jnp.dot(src_q, wtau_ref[...], preferred_element_type=f32) + btau_ref[...]  # [TQ, H]

    # Q projection for this tile on the MXU (bf16 in, f32 out).
    q = jnp.dot(q_in, wq_ref[...], preferred_element_type=f32) + bq_ref[...]   # [TQ, C]
    q_bf = q.astype(cdt)
    k_bf = k_scratch[...]                  # [Q, C] bf16 (cached)
    v_bf = v_scratch[...]                  # [Q, C] bf16 (cached)

    # Per-head masked attention; head outputs land in a VMEM scratch slab (no concat).
    # TODO(synk): boolean attn_mask path (data-dependent -inf scatter) is not implemented;
    #             only the dist * tau additive bias (attn_mask=None in the module) is supported.
    for h in range(NUM_HEADS):
        lo, hi = h * D, (h + 1) * D
        s = lax.dot_general(q_bf[:, lo:hi], k_bf[:, lo:hi],
                            (((1,), (1,)), ((), ())),
                            preferred_element_type=f32) * scale          # [TQ, Q]
        s = s + dist * tau[:, h:h + 1]                                    # additive attn bias
        s = s - jnp.max(s, axis=-1, keepdims=True)
        p = jnp.exp(s)
        p = p * pl.reciprocal(jnp.sum(p, axis=-1, keepdims=True), approx=True)
        o = jnp.dot(p.astype(cdt), v_bf[:, lo:hi],
                    preferred_element_type=f32)                           # [TQ, D]
        attn_scratch[:, lo:hi] = o

    # One wide output projection from the scratch slab.
    attn = jnp.dot(attn_scratch[...].astype(cdt), wo_ref[...],
                   preferred_element_type=f32) + bo_ref[...]              # [TQ, C]

    # Residual + LayerNorm1 (f32).
    x1 = src_q + attn
    mu1 = jnp.mean(x1, axis=-1, keepdims=True)
    var1 = jnp.mean((x1 - mu1) ** 2, axis=-1, keepdims=True)
    x1 = (x1 - mu1) * lax.rsqrt(var1 + LN_EPS) * g1_ref[...] + beta1_ref[...]

    # FFN: linear2(relu(linear1(x1)))  (bf16 matmuls, f32 accumulation).
    h1 = jnp.dot(x1.astype(cdt), w1_ref[...], preferred_element_type=f32) + bf1_ref[...]
    h1 = jnp.maximum(h1, 0.0)                       # nn.ReLU()
    h2 = jnp.dot(h1.astype(cdt), w2_ref[...], preferred_element_type=f32) + bf2_ref[...]

    # Residual + LayerNorm2 (f32).
    x2 = x1 + h2
    mu2 = jnp.mean(x2, axis=-1, keepdims=True)
    var2 = jnp.mean((x2 - mu2) ** 2, axis=-1, keepdims=True)
    x2 = (x2 - mu2) * lax.rsqrt(var2 + LN_EPS) * g2_ref[...] + beta2_ref[...]

    out_ref[0] = x2.astype(out_ref.dtype)


# --------------------------------------------------------------------------
# Wrapper
# --------------------------------------------------------------------------
_WEIGHT_ORDER = ["wq", "bq", "wk", "bk", "wv", "bv", "wo", "bo",
                 "wtau", "btau",
                 "g1", "beta1", "w1", "bf1", "w2", "bf2", "g2", "beta2"]
_BF16_WEIGHTS = {"wq", "wk", "wv", "wo", "w1", "w2"}


def _replicated_spec(arr):
    # Grid-invariant operand: constant block index => fetched once, never re-DMA'd.
    return pl.BlockSpec(arr.shape, lambda b, t: (0, 0))


def scale_adaptive_decoder_layer(embed, dist, params, query_pos=None, *, q_tile=None):
    """embed: [B, Q, C], dist: [B, Q, Q], query_pos: [B, Q, C] or None."""
    B, Q, C = embed.shape
    assert C % NUM_HEADS == 0
    if query_pos is None:
        query_pos = jnp.zeros_like(embed)
    if q_tile is None:
        q_tile = Q if Q <= 128 else 128
    assert Q % q_tile == 0 and (q_tile % 8 == 0 or q_tile == Q)

    weights = [params[n].astype(COMPUTE_DTYPE) if n in _BF16_WEIGHTS else
               params[n].astype(jnp.float32) for n in _WEIGHT_ORDER]

    in_specs = [
        pl.BlockSpec((1, q_tile, C), lambda b, t: (b, t, 0)),   # embed (query tile)
        pl.BlockSpec((1, Q, C),      lambda b, t: (b, 0, 0)),   # embed (full rows -> K/V)
        pl.BlockSpec((1, q_tile, C), lambda b, t: (b, t, 0)),   # query_pos (query tile)
        pl.BlockSpec((1, Q, C),      lambda b, t: (b, 0, 0)),   # query_pos (full rows)
        pl.BlockSpec((1, q_tile, Q), lambda b, t: (b, t, 0)),   # dist (query-tile rows)
    ] + [_replicated_spec(w) for w in weights]

    # Explicit VMEM budget: double-buffered operands + scratch + headroom for temporaries.
    act_elems = 2 * (2 * q_tile * C + 2 * Q * C + q_tile * Q + q_tile * C)
    w_bytes = 2 * sum(int(w.size) * w.dtype.itemsize for w in weights)
    scratch_bytes = q_tile * C * 4 + 2 * Q * C * 2
    vmem_bytes = w_bytes + act_elems * 4 + scratch_bytes
    vmem_bytes = min(max(4 * vmem_bytes, 16 * 1024 * 1024), 48 * 1024 * 1024)

    out = pl.pallas_call(
        _decoder_layer_kernel,
        out_shape=jax.ShapeDtypeStruct((B, Q, C), jnp.float32),
        grid=(B, Q // q_tile),
        in_specs=in_specs,
        out_specs=pl.BlockSpec((1, q_tile, C), lambda b, t: (b, t, 0)),
        scratch_shapes=[
            pltpu.VMEM((q_tile, C), jnp.float32),     # attention head-output slab
            pltpu.VMEM((Q, C), COMPUTE_DTYPE),        # cached K projection (per batch)
            pltpu.VMEM((Q, C), COMPUTE_DTYPE),        # cached V projection (per batch)
        ],
        compiler_params=pltpu.CompilerParams(
            # query-tile axis carries the cached K/V scratch -> must be "arbitrary";
            # batch axis stays "parallel" for megacore sharding.
            dimension_semantics=("parallel", "arbitrary"),
            vmem_limit_bytes=int(vmem_bytes),
        ),
    )(embed, embed, query_pos, query_pos, dist, *weights)
    return out


# --------------------------------------------------------------------------
# Pure-JAX f32 reference (exact PyTorch forward semantics) for correctness check
# --------------------------------------------------------------------------
def reference_forward(embed, dist, params, query_pos=None):
    B, Q, C = embed.shape
    H, D = NUM_HEADS, C // NUM_HEADS
    if query_pos is None:
        query_pos = jnp.zeros_like(embed)

    tau = embed @ params["wtau"] + params["btau"]            # [B, Q, H]
    tau = jnp.transpose(tau, (0, 2, 1))                      # [B, H, Q]
    mask = dist[:, None, :, :] * tau[..., None]              # [B, H, Q, Q]

    qk = embed + query_pos
    q = qk @ params["wq"] + params["bq"]
    k = qk @ params["wk"] + params["bk"]
    v = embed @ params["wv"] + params["bv"]

    def split(t):
        return jnp.transpose(t.reshape(B, Q, H, D), (0, 2, 1, 3))

    qh, kh, vh = split(q), split(k), split(v)
    s = jnp.einsum("bhqd,bhkd->bhqk", qh, kh) / math.sqrt(D) + mask
    p = jax.nn.softmax(s, axis=-1)
    o = jnp.einsum("bhqk,bhkd->bhqd", p, vh)
    o = jnp.transpose(o, (0, 2, 1, 3)).reshape(B, Q, C)
    attn = o @ params["wo"] + params["bo"]

    def ln(x, g, b):
        mu = jnp.mean(x, axis=-1, keepdims=True)
        var = jnp.mean((x - mu) ** 2, axis=-1, keepdims=True)
        return (x - mu) * lax.rsqrt(var + LN_EPS) * g + b

    x1 = ln(embed + attn, params["g1"], params["beta1"])
    h1 = jax.nn.relu(x1 @ params["w1"] + params["bf1"])
    h2 = h1 @ params["w2"] + params["bf2"]
    return ln(x1 + h2, params["g2"], params["beta2"])


# --------------------------------------------------------------------------
# Deterministic parameter init (x @ W convention; shapes match the module)
# --------------------------------------------------------------------------
def init_params(key, c, n_heads, d_ffn):
    ks = jax.random.split(key, 8)
    f32 = jnp.float32
    sc = 1.0 / math.sqrt(c)
    sf = 1.0 / math.sqrt(d_ffn)
    return {
        # MultiheadAttention in/out projections
        "wq": jax.random.normal(ks[0], (c, c), f32) * sc, "bq": jnp.zeros((1, c), f32),
        "wk": jax.random.normal(ks[1], (c, c), f32) * sc, "bk": jnp.zeros((1, c), f32),
        "wv": jax.random.normal(ks[2], (c, c), f32) * sc, "bv": jnp.zeros((1, c), f32),
        "wo": jax.random.normal(ks[3], (c, c), f32) * sc, "bo": jnp.zeros((1, c), f32),
        # gen_tau (module zero-inits the weight; random here to actually exercise the path)
        "wtau": jax.random.normal(ks[4], (c, n_heads), f32) * 0.1,
        "btau": jax.random.uniform(ks[5], (1, n_heads), f32, 0.0, 2.0),
        # LayerNorm1
        "g1": jnp.ones((1, c), f32), "beta1": jnp.zeros((1, c), f32),
        # FFN
        "w1": jax.random.normal(ks[6], (c, d_ffn), f32) * sc, "bf1": jnp.zeros((1, d_ffn), f32),
        "w2": jax.random.normal(ks[7], (d_ffn, c), f32) * sf, "bf2": jnp.zeros((1, c), f32),
        # LayerNorm2
        "g2": jnp.ones((1, c), f32), "beta2": jnp.zeros((1, c), f32),
    }


if __name__ == "__main__":
    B, Q, C, D_FFN = 2, 16, 32, 64    # small stand-ins for d_model=256, d_ffn=1024, n_heads=8

    key = jax.random.PRNGKey(0)
    k1, k2, k3, k4 = jax.random.split(key, 4)
    embed = jax.random.normal(k1, (B, Q, C), jnp.float32)
    query_pos = jax.random.normal(k2, (B, Q, C), jnp.float32) * 0.5
    dist = jax.random.normal(k3, (B, Q, Q), jnp.float32)
    params = init_params(k4, C, NUM_HEADS, D_FFN)

    # q_tile=8 -> 2 query tiles per batch element, exercising the cached-K/V path.
    out = scale_adaptive_decoder_layer(embed, dist, params, query_pos, q_tile=8)
    out = jax.block_until_ready(out)

    ref = reference_forward(embed, dist, params, query_pos)
    assert out.shape == (B, Q, C)
    # Kernel uses bf16 MXU operands while the reference is exact f32;
    # tolerance reflects bf16 precision. Semantic bugs show up as O(1) errors post-LayerNorm.
    max_err = float(jnp.max(jnp.abs(out - ref)))
    assert jnp.allclose(out, ref, atol=1e-1, rtol=1e-1), f"mismatch vs reference, max_abs_err={max_err}"

    print("KERNEL_OK")
</pallas_src>

<mosaic_0001>
module attributes {stable_mosaic.version = 11 : i64} {
  func.func @_decoder_layer_kernel(%arg0: i32, %arg1: i32, %arg2: memref<1x8x32xf32, #tpu.memory_space<vmem>>, %arg3: memref<1x16x32xf32, #tpu.memory_space<vmem>>, %arg4: memref<1x8x32xf32, #tpu.memory_space<vmem>>, %arg5: memref<1x16x32xf32, #tpu.memory_space<vmem>>, %arg6: memref<1x8x16xf32, #tpu.memory_space<vmem>>, %arg7: memref<32x32xbf16, #tpu.memory_space<vmem>>, %arg8: memref<1x32xf32, #tpu.memory_space<vmem>>, %arg9: memref<32x32xbf16, #tpu.memory_space<vmem>>, %arg10: memref<1x32xf32, #tpu.memory_space<vmem>>, %arg11: memref<32x32xbf16, #tpu.memory_space<vmem>>, %arg12: memref<1x32xf32, #tpu.memory_space<vmem>>, %arg13: memref<32x32xbf16, #tpu.memory_space<vmem>>, %arg14: memref<1x32xf32, #tpu.memory_space<vmem>>, %arg15: memref<32x8xf32, #tpu.memory_space<vmem>>, %arg16: memref<1x8xf32, #tpu.memory_space<vmem>>, %arg17: memref<1x32xf32, #tpu.memory_space<vmem>>, %arg18: memref<1x32xf32, #tpu.memory_space<vmem>>, %arg19: memref<32x64xbf16, #tpu.memory_space<vmem>>, %arg20: memref<1x64xf32, #tpu.memory_space<vmem>>, %arg21: memref<64x32xbf16, #tpu.memory_space<vmem>>, %arg22: memref<1x32xf32, #tpu.memory_space<vmem>>, %arg23: memref<1x32xf32, #tpu.memory_space<vmem>>, %arg24: memref<1x32xf32, #tpu.memory_space<vmem>>, %arg25: memref<1x8x32xf32, #tpu.memory_space<vmem>>, %arg26: memref<8x32xf32, #tpu.memory_space<vmem>>, %arg27: memref<16x32xbf16, #tpu.memory_space<vmem>>, %arg28: memref<16x32xbf16, #tpu.memory_space<vmem>>) attributes {dimension_semantics = [#tpu.dimension_semantics<parallel>, #tpu.dimension_semantics<arbitrary>], iteration_bounds = array<i64: 2, 2>, scalar_prefetch = 0 : i64, scratch_operands = 3 : i64, tpu.core_type = #tpu.core_type<tc>, window_params = [{transform_indices = @transform_0, window_bounds = array<i64: 1, 8, 32>}, {transform_indices = @transform_1, window_bounds = array<i64: 1, 16, 32>}, {transform_indices = @transform_2, window_bounds = array<i64: 1, 8, 32>}, {transform_indices = @transform_3, window_bounds = array<i64: 1, 16, 32>}, {transform_indices = @transform_4, window_bounds = array<i64: 1, 8, 16>}, {pipeline_mode = #tpu.pipeline_mode<synchronous>, transform_indices = @transform_5, window_bounds = array<i64: 32, 32>}, {pipeline_mode = #tpu.pipeline_mode<synchronous>, transform_indices = @transform_6, window_bounds = array<i64: 1, 32>}, {pipeline_mode = #tpu.pipeline_mode<synchronous>, transform_indices = @transform_7, window_bounds = array<i64: 32, 32>}, {pipeline_mode = #tpu.pipeline_mode<synchronous>, transform_indices = @transform_8, window_bounds = array<i64: 1, 32>}, {pipeline_mode = #tpu.pipeline_mode<synchronous>, transform_indices = @transform_9, window_bounds = array<i64: 32, 32>}, {pipeline_mode = #tpu.pipeline_mode<synchronous>, transform_indices = @transform_10, window_bounds = array<i64: 1, 32>}, {pipeline_mode = #tpu.pipeline_mode<synchronous>, transform_indices = @transform_11, window_bounds = array<i64: 32, 32>}, {pipeline_mode = #tpu.pipeline_mode<synchronous>, transform_indices = @transform_12, window_bounds = array<i64: 1, 32>}, {pipeline_mode = #tpu.pipeline_mode<synchronous>, transform_indices = @transform_13, window_bounds = array<i64: 32, 8>}, {pipeline_mode = #tpu.pipeline_mode<synchronous>, transform_indices = @transform_14, window_bounds = array<i64: 1, 8>}, {pipeline_mode = #tpu.pipeline_mode<synchronous>, transform_indices = @transform_15, window_bounds = array<i64: 1, 32>}, {pipeline_mode = #tpu.pipeline_mode<synchronous>, transform_indices = @transform_16, window_bounds = array<i64: 1, 32>}, {pipeline_mode = #tpu.pipeline_mode<synchronous>, transform_indices = @transform_17, window_bounds = array<i64: 32, 64>}, {pipeline_mode = #tpu.pipeline_mode<synchronous>, transform_indices = @transform_18, window_bounds = array<i64: 1, 64>}, {pipeline_mode = #tpu.pipeline_mode<synchronous>, transform_indices = @transform_19, window_bounds = array<i64: 64, 32>}, {pipeline_mode = #tpu.pipeline_mode<synchronous>, transform_indices = @transform_20, window_bounds = array<i64: 1, 32>}, {pipeline_mode = #tpu.pipeline_mode<synchronous>, transform_indices = @transform_21, window_bounds = array<i64: 1, 32>}, {pipeline_mode = #tpu.pipeline_mode<synchronous>, transform_indices = @transform_22, window_bounds = array<i64: 1, 32>}, {transform_indices = @transform_23, window_bounds = array<i64: 1, 8, 32>}]} {
    %c0_i32 = arith.constant 0 : i32
    %0 = arith.cmpi eq, %arg1, %c0_i32 : i32
    %1 = arith.extui %0 : i1 to i32
    %c0_i32_0 = arith.constant 0 : i32
    %2 = arith.cmpi ne, %1, %c0_i32_0 : i32
    scf.if %2 {
      %c0_110 = arith.constant 0 : index
      %c0_111 = arith.constant 0 : index
      %c0_112 = arith.constant 0 : index
      %282 = vector.load %arg3[%c0_110, %c0_111, %c0_112] : memref<1x16x32xf32, #tpu.memory_space<vmem>>, vector<1x16x32xf32>
      %283 = vector.shape_cast %282 : vector<1x16x32xf32> to vector<16x32xf32>
      %c0_113 = arith.constant 0 : index
      %c0_114 = arith.constant 0 : index
      %c0_115 = arith.constant 0 : index
      %284 = vector.load %arg5[%c0_113, %c0_114, %c0_115] : memref<1x16x32xf32, #tpu.memory_space<vmem>>, vector<1x16x32xf32>
      %285 = vector.shape_cast %284 : vector<1x16x32xf32> to vector<16x32xf32>
      %286 = arith.addf %283, %285 : vector<16x32xf32>
      %287 = arith.truncf %286 : vector<16x32xf32> to vector<16x32xbf16>
      %288 = arith.truncf %283 : vector<16x32xf32> to vector<16x32xbf16>
      %c0_116 = arith.constant 0 : index
      %c0_117 = arith.constant 0 : index
      %289 = vector.load %arg9[%c0_116, %c0_117] : memref<32x32xbf16, #tpu.memory_space<vmem>>, vector<32x32xbf16>
      %cst_118 = arith.constant dense<0.000000e+00> : vector<16x32xf32>
      %290 = tpu.matmul %287, %289, %cst_118 {dimension_numbers = #tpu.dot_dimension_numbers<[1], [0], [0], [1], [0, 0, 1, 1], [], []>} : vector<16x32xbf16>, vector<32x32xbf16>, vector<16x32xf32> -> vector<16x32xf32>
      %c0_119 = arith.constant 0 : index
      %c0_120 = arith.constant 0 : index
      %291 = vector.load %arg10[%c0_119, %c0_120] : memref<1x32xf32, #tpu.memory_space<vmem>>, vector<1x32xf32>
      %292 = vector.broadcast %291 : vector<1x32xf32> to vector<16x32xf32>
      %293 = arith.addf %290, %292 : vector<16x32xf32>
      %c0_121 = arith.constant 0 : index
      %c0_122 = arith.constant 0 : index
      %294 = vector.load %arg11[%c0_121, %c0_122] : memref<32x32xbf16, #tpu.memory_space<vmem>>, vector<32x32xbf16>
      %cst_123 = arith.constant dense<0.000000e+00> : vector<16x32xf32>
      %295 = tpu.matmul %288, %294, %cst_123 {dimension_numbers = #tpu.dot_dimension_numbers<[1], [0], [0], [1], [0, 0, 1, 1], [], []>} : vector<16x32xbf16>, vector<32x32xbf16>, vector<16x32xf32> -> vector<16x32xf32>
      %c0_124 = arith.constant 0 : index
      %c0_125 = arith.constant 0 : index
      %296 = vector.load %arg12[%c0_124, %c0_125] : memref<1x32xf32, #tpu.memory_space<vmem>>, vector<1x32xf32>
      %297 = vector.broadcast %296 : vector<1x32xf32> to vector<16x32xf32>
      %298 = arith.addf %295, %297 : vector<16x32xf32>
      %299 = arith.truncf %293 : vector<16x32xf32> to vector<16x32xbf16>
      %c0_126 = arith.constant 0 : index
      %c0_127 = arith.constant 0 : index
      %300 = vector.load %arg27[%c0_126, %c0_127] : memref<16x32xbf16, #tpu.memory_space<vmem>>, vector<16x32xbf16>
      tpu.vector_store %arg27[%c0_126, %c0_127], %299 {strides = array<i32>} : memref<16x32xbf16, #tpu.memory_space<vmem>>, vector<16x32xbf16>,
      %301 = arith.truncf %298 : vector<16x32xf32> to vector<16x32xbf16>
      %c0_128 = arith.constant 0 : index
      %c0_129 = arith.constant 0 : index
      %302 = vector.load %arg28[%c0_128, %c0_129] : memref<16x32xbf16, #tpu.memory_space<vmem>>, vector<16x32xbf16>
      tpu.vector_store %arg28[%c0_128, %c0_129], %301 {strides = array<i32>} : memref<16x32xbf16, #tpu.memory_space<vmem>>, vector<16x32xbf16>,
    } else {
    }
    %c0 = arith.constant 0 : index
    %c0_1 = arith.constant 0 : index
    %c0_2 = arith.constant 0 : index
    %3 = vector.load %arg2[%c0, %c0_1, %c0_2] : memref<1x8x32xf32, #tpu.memory_space<vmem>>, vector<1x8x32xf32>
    %4 = vector.shape_cast %3 : vector<1x8x32xf32> to vector<8x32xf32>
    %c0_3 = arith.constant 0 : index
    %c0_4 = arith.constant 0 : index
    %c0_5 = arith.constant 0 : index
    %5 = vector.load %arg4[%c0_3, %c0_4, %c0_5] : memref<1x8x32xf32, #tpu.memory_space<vmem>>, vector<1x8x32xf32>
    %6 = vector.shape_cast %5 : vector<1x8x32xf32> to vector<8x32xf32>
    %7 = arith.addf %4, %6 : vector<8x32xf32>
    %8 = arith.truncf %7 : vector<8x32xf32> to vector<8x32xbf16>
    %c0_6 = arith.constant 0 : index
    %c0_7 = arith.constant 0 : index
    %c0_8 = arith.constant 0 : index
    %9 = vector.load %arg6[%c0_6, %c0_7, %c0_8] : memref<1x8x16xf32, #tpu.memory_space<vmem>>, vector<1x8x16xf32>
    %10 = vector.shape_cast %9 : vector<1x8x16xf32> to vector<8x16xf32>
    %c0_9 = arith.constant 0 : index
    %c0_10 = arith.constant 0 : index
    %11 = vector.load %arg15[%c0_9, %c0_10] : memref<32x8xf32, #tpu.memory_space<vmem>>, vector<32x8xf32>
    %cst = arith.constant dense<0.000000e+00> : vector<8x8xf32>
    %12 = tpu.matmul %4, %11, %cst {dimension_numbers = #tpu.dot_dimension_numbers<[1], [0], [0], [1], [0, 0, 1, 1], [], []>} : vector<8x32xf32>, vector<32x8xf32>, vector<8x8xf32> -> vector<8x8xf32>
    %c0_11 = arith.constant 0 : index
    %c0_12 = arith.constant 0 : index
    %13 = vector.load %arg16[%c0_11, %c0_12] : memref<1x8xf32, #tpu.memory_space<vmem>>, vector<1x8xf32>
    %14 = vector.broadcast %13 : vector<1x8xf32> to vector<8x8xf32>
    %15 = arith.addf %12, %14 : vector<8x8xf32>
    %c0_13 = arith.constant 0 : index
    %c0_14 = arith.constant 0 : index
    %16 = vector.load %arg7[%c0_13, %c0_14] : memref<32x32xbf16, #tpu.memory_space<vmem>>, vector<32x32xbf16>
    %cst_15 = arith.constant dense<0.000000e+00> : vector<8x32xf32>
    %17 = tpu.matmul %8, %16, %cst_15 {dimension_numbers = #tpu.dot_dimension_numbers<[1], [0], [0], [1], [0, 0, 1, 1], [], []>} : vector<8x32xbf16>, vector<32x32xbf16>, vector<8x32xf32> -> vector<8x32xf32>
    %c0_16 = arith.constant 0 : index
    %c0_17 = arith.constant 0 : index
    %18 = vector.load %arg8[%c0_16, %c0_17] : memref<1x32xf32, #tpu.memory_space<vmem>>, vector<1x32xf32>
    %19 = vector.broadcast %18 : vector<1x32xf32> to vector<8x32xf32>
    %20 = arith.addf %17, %19 : vector<8x32xf32>
    %21 = arith.truncf %20 : vector<8x32xf32> to vector<8x32xbf16>
    %c0_18 = arith.constant 0 : index
    %c0_19 = arith.constant 0 : index
    %22 = vector.load %arg27[%c0_18, %c0_19] : memref<16x32xbf16, #tpu.memory_space<vmem>>, vector<16x32xbf16>
    %c0_20 = arith.constant 0 : index
    %c0_21 = arith.constant 0 : index
    %23 = vector.load %arg28[%c0_20, %c0_21] : memref<16x32xbf16, #tpu.memory_space<vmem>>, vector<16x32xbf16>
    %24 = vector.extract_strided_slice %21 {offsets = [0, 0], sizes = [8, 4], strides = [1, 1]} : vector<8x32xbf16> to vector<8x4xbf16>
    %25 = vector.extract_strided_slice %22 {offsets = [0, 0], sizes = [16, 4], strides = [1, 1]} : vector<16x32xbf16> to vector<16x4xbf16>
    %cst_22 = arith.constant dense<0.000000e+00> : vector<8x16xf32>
    %26 = tpu.matmul %24, %25, %cst_22 {dimension_numbers = #tpu.dot_dimension_numbers<[1], [1], [0], [0], [0, 0, 1, 0], [], []>} : vector<8x4xbf16>, vector<16x4xbf16>, vector<8x16xf32> -> vector<8x16xf32>
    %cst_23 = arith.constant 5.000000e-01 : f32
    %27 = vector.broadcast %cst_23 : f32 to vector<8x16xf32>
    %28 = arith.mulf %26, %27 : vector<8x16xf32>
    %29 = vector.extract_strided_slice %15 {offsets = [0, 0], sizes = [8, 1], strides = [1, 1]} : vector<8x8xf32> to vector<8x1xf32>
    %30 = vector.broadcast %29 : vector<8x1xf32> to vector<8x16xf32>
    %31 = arith.mulf %10, %30 : vector<8x16xf32>
    %32 = arith.addf %28, %31 : vector<8x16xf32>
    %cst_24 = arith.constant dense<0xFF800000> : vector<8xf32>
    %33 = vector.multi_reduction <maximumf>, %32, %cst_24 [1] : vector<8x16xf32> to vector<8xf32>
    %34 = vector.shape_cast %33 : vector<8xf32> to vector<8x1xf32>
    %35 = vector.broadcast %34 : vector<8x1xf32> to vector<8x16xf32>
    %36 = arith.subf %32, %35 : vector<8x16xf32>
    %37 = math.exp %36 : vector<8x16xf32>
    %cst_25 = arith.constant dense<0.000000e+00> : vector<8xf32>
    %38 = vector.multi_reduction <add>, %37, %cst_25 [1] : vector<8x16xf32> to vector<8xf32>
    %39 = vector.shape_cast %38 : vector<8xf32> to vector<8x1xf32>
    %40 = tpu.reciprocal %39 {approx = true} : vector<8x1xf32> -> vector<8x1xf32>
    %41 = vector.broadcast %40 : vector<8x1xf32> to vector<8x16xf32>
    %42 = arith.mulf %37, %41 : vector<8x16xf32>
    %43 = arith.truncf %42 : vector<8x16xf32> to vector<8x16xbf16>
    %44 = vector.extract_strided_slice %23 {offsets = [0, 0], sizes = [16, 4], strides = [1, 1]} : vector<16x32xbf16> to vector<16x4xbf16>
    %cst_26 = arith.constant dense<0.000000e+00> : vector<8x4xf32>
    %45 = tpu.matmul %43, %44, %cst_26 {dimension_numbers = #tpu.dot_dimension_numbers<[1], [0], [0], [1], [0, 0, 1, 1], [], []>} : vector<8x16xbf16>, vector<16x4xbf16>, vector<8x4xf32> -> vector<8x4xf32>
    %c0_27 = arith.constant 0 : index
    %c0_28 = arith.constant 0 : index
    %46 = vector.load %arg26[%c0_27, %c0_28] : memref<8x32xf32, #tpu.memory_space<vmem>>, vector<8x4xf32>
    tpu.vector_store %arg26[%c0_27, %c0_28], %45 {strides = array<i32>} : memref<8x32xf32, #tpu.memory_space<vmem>>, vector<8x4xf32>,
    %47 = vector.extract_strided_slice %21 {offsets = [0, 4], sizes = [8, 4], strides = [1, 1]} : vector<8x32xbf16> to vector<8x4xbf16>
    %48 = vector.extract_strided_slice %22 {offsets = [0, 4], sizes = [16, 4], strides = [1, 1]} : vector<16x32xbf16> to vector<16x4xbf16>
    %cst_29 = arith.constant dense<0.000000e+00> : vector<8x16xf32>
    %49 = tpu.matmul %47, %48, %cst_29 {dimension_numbers = #tpu.dot_dimension_numbers<[1], [1], [0], [0], [0, 0, 1, 0], [], []>} : vector<8x4xbf16>, vector<16x4xbf16>, vector<8x16xf32> -> vector<8x16xf32>
    %cst_30 = arith.constant 5.000000e-01 : f32
    %50 = vector.broadcast %cst_30 : f32 to vector<8x16xf32>
    %51 = arith.mulf %49, %50 : vector<8x16xf32>
    %52 = vector.extract_strided_slice %15 {offsets = [0, 1], sizes = [8, 1], strides = [1, 1]} : vector<8x8xf32> to vector<8x1xf32>
    %53 = vector.broadcast %52 : vector<8x1xf32> to vector<8x16xf32>
    %54 = arith.mulf %10, %53 : vector<8x16xf32>
    %55 = arith.addf %51, %54 : vector<8x16xf32>
    %cst_31 = arith.constant dense<0xFF800000> : vector<8xf32>
    %56 = vector.multi_reduction <maximumf>, %55, %cst_31 [1] : vector<8x16xf32> to vector<8xf32>
    %57 = vector.shape_cast %56 : vector<8xf32> to vector<8x1xf32>
    %58 = vector.broadcast %57 : vector<8x1xf32> to vector<8x16xf32>
    %59 = arith.subf %55, %58 : vector<8x16xf32>
    %60 = math.exp %59 : vector<8x16xf32>
    %cst_32 = arith.constant dense<0.000000e+00> : vector<8xf32>
    %61 = vector.multi_reduction <add>, %60, %cst_32 [1] : vector<8x16xf32> to vector<8xf32>
    %62 = vector.shape_cast %61 : vector<8xf32> to vector<8x1xf32>
    %63 = tpu.reciprocal %62 {approx = true} : vector<8x1xf32> -> vector<8x1xf32>
    %64 = vector.broadcast %63 : vector<8x1xf32> to vector<8x16xf32>
    %65 = arith.mulf %60, %64 : vector<8x16xf32>
    %66 = arith.truncf %65 : vector<8x16xf32> to vector<8x16xbf16>
    %67 = vector.extract_strided_slice %23 {offsets = [0, 4], sizes = [16, 4], strides = [1, 1]} : vector<16x32xbf16> to vector<16x4xbf16>
    %cst_33 = arith.constant dense<0.000000e+00> : vector<8x4xf32>
    %68 = tpu.matmul %66, %67, %cst_33 {dimension_numbers = #tpu.dot_dimension_numbers<[1], [0], [0], [1], [0, 0, 1, 1], [], []>} : vector<8x16xbf16>, vector<16x4xbf16>, vector<8x4xf32> -> vector<8x4xf32>
    %c0_34 = arith.constant 0 : index
    %c4 = arith.constant 4 : index
    %69 = vector.load %arg26[%c0_34, %c4] : memref<8x32xf32, #tpu.memory_space<vmem>>, vector<8x4xf32>
    tpu.vector_store %arg26[%c0_34, %c4], %68 {strides = array<i32>} : memref<8x32xf32, #tpu.memory_space<vmem>>, vector<8x4xf32>,
    %70 = vector.extract_strided_slice %21 {offsets = [0, 8], sizes = [8, 4], strides = [1, 1]} : vector<8x32xbf16> to vector<8x4xbf16>
    %71 = vector.extract_strided_slice %22 {offsets = [0, 8], sizes = [16, 4], strides = [1, 1]} : vector<16x32xbf16> to vector<16x4xbf16>
    %cst_35 = arith.constant dense<0.000000e+00> : vector<8x16xf32>
    %72 = tpu.matmul %70, %71, %cst_35 {dimension_numbers = #tpu.dot_dimension_numbers<[1], [1], [0], [0], [0, 0, 1, 0], [], []>} : vector<8x4xbf16>, vector<16x4xbf16>, vector<8x16xf32> -> vector<8x16xf32>
    %cst_36 = arith.constant 5.000000e-01 : f32
    %73 = vector.broadcast %cst_36 : f32 to vector<8x16xf32>
    %74 = arith.mulf %72, %73 : vector<8x16xf32>
    %75 = vector.extract_strided_slice %15 {offsets = [0, 2], sizes = [8, 1], strides = [1, 1]} : vector<8x8xf32> to vector<8x1xf32>
    %76 = vector.broadcast %75 : vector<8x1xf32> to vector<8x16xf32>
    %77 = arith.mulf %10, %76 : vector<8x16xf32>
    %78 = arith.addf %74, %77 : vector<8x16xf32>
    %cst_37 = arith.constant dense<0xFF800000> : vector<8xf32>
    %79 = vector.multi_reduction <maximumf>, %78, %cst_37 [1] : vector<8x16xf32> to vector<8xf32>
    %80 = vector.shape_cast %79 : vector<8xf32> to vector<8x1xf32>
    %81 = vector.broadcast %80 : vector<8x1xf32> to vector<8x16xf32>
    %82 = arith.subf %78, %81 : vector<8x16xf32>
    %83 = math.exp %82 : vector<8x16xf32>
    %cst_38 = arith.constant dense<0.000000e+00> : vector<8xf32>
    %84 = vector.multi_reduction <add>, %83, %cst_38 [1] : vector<8x16xf32> to vector<8xf32>
    %85 = vector.shape_cast %84 : vector<8xf32> to vector<8x1xf32>
    %86 = tpu.reciprocal %85 {approx = true} : vector<8x1xf32> -> vector<8x1xf32>
    %87 = vector.broadcast %86 : vector<8x1xf32> to vector<8x16xf32>
    %88 = arith.mulf %83, %87 : vector<8x16xf32>
    %89 = arith.truncf %88 : vector<8x16xf32> to vector<8x16xbf16>
    %90 = vector.extract_strided_slice %23 {offsets = [0, 8], sizes = [16, 4], strides = [1, 1]} : vector<16x32xbf16> to vector<16x4xbf16>
    %cst_39 = arith.constant dense<0.000000e+00> : vector<8x4xf32>
    %91 = tpu.matmul %89, %90, %cst_39 {dimension_numbers = #tpu.dot_dimension_numbers<[1], [0], [0], [1], [0, 0, 1, 1], [], []>} : vector<8x16xbf16>, vector<16x4xbf16>, vector<8x4xf32> -> vector<8x4xf32>
    %c0_40 = arith.constant 0 : index
    %c8 = arith.constant 8 : index
    %92 = vector.load %arg26[%c0_40, %c8] : memref<8x32xf32, #tpu.memory_space<vmem>>, vector<8x4xf32>
    tpu.vector_store %arg26[%c0_40, %c8], %91 {strides = array<i32>} : memref<8x32xf32, #tpu.memory_space<vmem>>, vector<8x4xf32>,
    %93 = vector.extract_strided_slice %21 {offsets = [0, 12], sizes = [8, 4], strides = [1, 1]} : vector<8x32xbf16> to vector<8x4xbf16>
    %94 = vector.extract_strided_slice %22 {offsets = [0, 12], sizes = [16, 4], strides = [1, 1]} : vector<16x32xbf16> to vector<16x4xbf16>
    %cst_41 = arith.constant dense<0.000000e+00> : vector<8x16xf32>
    %95 = tpu.matmul %93, %94, %cst_41 {dimension_numbers = #tpu.dot_dimension_numbers<[1], [1], [0], [0], [0, 0, 1, 0], [], []>} : vector<8x4xbf16>, vector<16x4xbf16>, vector<8x16xf32> -> vector<8x16xf32>
    %cst_42 = arith.constant 5.000000e-01 : f32
    %96 = vector.broadcast %cst_42 : f32 to vector<8x16xf32>
    %97 = arith.mulf %95, %96 : vector<8x16xf32>
    %98 = vector.extract_strided_slice %15 {offsets = [0, 3], sizes = [8, 1], strides = [1, 1]} : vector<8x8xf32> to vector<8x1xf32>
    %99 = vector.broadcast %98 : vector<8x1xf32> to vector<8x16xf32>
    %100 = arith.mulf %10, %99 : vector<8x16xf32>
    %101 = arith.addf %97, %100 : vector<8x16xf32>
    %cst_43 = arith.constant dense<0xFF800000> : vector<8xf32>
    %102 = vector.multi_reduction <maximumf>, %101, %cst_43 [1] : vector<8x16xf32> to vector<8xf32>
    %103 = vector.shape_cast %102 : vector<8xf32> to vector<8x1xf32>
    %104 = vector.broadcast %103 : vector<8x1xf32> to vector<8x16xf32>
    %105 = arith.subf %101, %104 : vector<8x16xf32>
    %106 = math.exp %105 : vector<8x16xf32>
    %cst_44 = arith.constant dense<0.000000e+00> : vector<8xf32>
    %107 = vector.multi_reduction <add>, %106, %cst_44 [1] : vector<8x16xf32> to vector<8xf32>
    %108 = vector.shape_cast %107 : vector<8xf32> to vector<8x1xf32>
    %109 = tpu.reciprocal %108 {approx = true} : vector<8x1xf32> -> vector<8x1xf32>
    %110 = vector.broadcast %109 : vector<8x1xf32> to vector<8x16xf32>
    %111 = arith.mulf %106, %110 : vector<8x16xf32>
    %112 = arith.truncf %111 : vector<8x16xf32> to vector<8x16xbf16>
    %113 = vector.extract_strided_slice %23 {offsets = [0, 12], sizes = [16, 4], strides = [1, 1]} : vector<16x32xbf16> to vector<16x4xbf16>
    %cst_45 = arith.constant dense<0.000000e+00> : vector<8x4xf32>
    %114 = tpu.matmul %112, %113, %cst_45 {dimension_numbers = #tpu.dot_dimension_numbers<[1], [0], [0], [1], [0, 0, 1, 1], [], []>} : vector<8x16xbf16>, vector<16x4xbf16>, vector<8x4xf32> -> vector<8x4xf32>
    %c0_46 = arith.constant 0 : index
    %c12 = arith.constant 12 : index
    %115 = vector.load %arg26[%c0_46, %c12] : memref<8x32xf32, #tpu.memory_space<vmem>>, vector<8x4xf32>
    tpu.vector_store %arg26[%c0_46, %c12], %114 {strides = array<i32>} : memref<8x32xf32, #tpu.memory_space<vmem>>, vector<8x4xf32>,
    %116 = vector.extract_strided_slice %21 {offsets = [0, 16], sizes = [8, 4], strides = [1, 1]} : vector<8x32xbf16> to vector<8x4xbf16>
    %117 = vector.extract_strided_slice %22 {offsets = [0, 16], sizes = [16, 4], strides = [1, 1]} : vector<16x32xbf16> to vector<16x4xbf16>
    %cst_47 = arith.constant dense<0.000000e+00> : vector<8x16xf32>
    %118 = tpu.matmul %116, %117, %cst_47 {dimension_numbers = #tpu.dot_dimension_numbers<[1], [1], [0], [0], [0, 0, 1, 0], [], []>} : vector<8x4xbf16>, vector<16x4xbf16>, vector<8x16xf32> -> vector<8x16xf32>
    %cst_48 = arith.constant 5.000000e-01 : f32
    %119 = vector.broadcast %cst_48 : f32 to vector<8x16xf32>
    %120 = arith.mulf %118, %119 : vector<8x16xf32>
    %121 = vector.extract_strided_slice %15 {offsets = [0, 4], sizes = [8, 1], strides = [1, 1]} : vector<8x8xf32> to vector<8x1xf32>
    %122 = vector.broadcast %121 : vector<8x1xf32> to vector<8x16xf32>
    %123 = arith.mulf %10, %122 : vector<8x16xf32>
    %124 = arith.addf %120, %123 : vector<8x16xf32>
    %cst_49 = arith.constant dense<0xFF800000> : vector<8xf32>
    %125 = vector.multi_reduction <maximumf>, %124, %cst_49 [1] : vector<8x16xf32> to vector<8xf32>
    %126 = vector.shape_cast %125 : vector<8xf32> to vector<8x1xf32>
    %127 = vector.broadcast %126 : vector<8x1xf32> to vector<8x16xf32>
    %128 = arith.subf %124, %127 : vector<8x16xf32>
    %129 = math.exp %128 : vector<8x16xf32>
    %cst_50 = arith.constant dense<0.000000e+00> : vector<8xf32>
    %130 = vector.multi_reduction <add>, %129, %cst_50 [1] : vector<8x16xf32> to vector<8xf32>
    %131 = vector.shape_cast %130 : vector<8xf32> to vector<8x1xf32>
    %132 = tpu.reciprocal %131 {approx = true} : vector<8x1xf32> -> vector<8x1xf32>
    %133 = vector.broadcast %132 : vector<8x1xf32> to vector<8x16xf32>
    %134 = arith.mulf %129, %133 : vector<8x16xf32>
    %135 = arith.truncf %134 : vector<8x16xf32> to vector<8x16xbf16>
    %136 = vector.extract_strided_slice %23 {offsets = [0, 16], sizes = [16, 4], strides = [1, 1]} : vector<16x32xbf16> to vector<16x4xbf16>
    %cst_51 = arith.constant dense<0.000000e+00> : vector<8x4xf32>
    %137 = tpu.matmul %135, %136, %cst_51 {dimension_numbers = #tpu.dot_dimension_numbers<[1], [0], [0], [1], [0, 0, 1, 1], [], []>} : vector<8x16xbf16>, vector<16x4xbf16>, vector<8x4xf32> -> vector<8x4xf32>
    %c0_52 = arith.constant 0 : index
    %c16 = arith.constant 16 : index
    %138 = vector.load %arg26[%c0_52, %c16] : memref<8x32xf32, #tpu.memory_space<vmem>>, vector<8x4xf32>
    tpu.vector_store %arg26[%c0_52, %c16], %137 {strides = array<i32>} : memref<8x32xf32, #tpu.memory_space<vmem>>, vector<8x4xf32>,
    %139 = vector.extract_strided_slice %21 {offsets = [0, 20], sizes = [8, 4], strides = [1, 1]} : vector<8x32xbf16> to vector<8x4xbf16>
    %140 = vector.extract_strided_slice %22 {offsets = [0, 20], sizes = [16, 4], strides = [1, 1]} : vector<16x32xbf16> to vector<16x4xbf16>
    %cst_53 = arith.constant dense<0.000000e+00> : vector<8x16xf32>
    %141 = tpu.matmul %139, %140, %cst_53 {dimension_numbers = #tpu.dot_dimension_numbers<[1], [1], [0], [0], [0, 0, 1, 0], [], []>} : vector<8x4xbf16>, vector<16x4xbf16>, vector<8x16xf32> -> vector<8x16xf32>
    %cst_54 = arith.constant 5.000000e-01 : f32
    %142 = vector.broadcast %cst_54 : f32 to vector<8x16xf32>
    %143 = arith.mulf %141, %142 : vector<8x16xf32>
    %144 = vector.extract_strided_slice %15 {offsets = [0, 5], sizes = [8, 1], strides = [1, 1]} : vector<8x8xf32> to vector<8x1xf32>
    %145 = vector.broadcast %144 : vector<8x1xf32> to vector<8x16xf32>
    %146 = arith.mulf %10, %145 : vector<8x16xf32>
    %147 = arith.addf %143, %146 : vector<8x16xf32>
    %cst_55 = arith.constant dense<0xFF800000> : vector<8xf32>
    %148 = vector.multi_reduction <maximumf>, %147, %cst_55 [1] : vector<8x16xf32> to vector<8xf32>
    %149 = vector.shape_cast %148 : vector<8xf32> to vector<8x1xf32>
    %150 = vector.broadcast %149 : vector<8x1xf32> to vector<8x16xf32>
    %151 = arith.subf %147, %150 : vector<8x16xf32>
    %152 = math.exp %151 : vector<8x16xf32>
    %cst_56 = arith.constant dense<0.000000e+00> : vector<8xf32>
    %153 = vector.multi_reduction <add>, %152, %cst_56 [1] : vector<8x16xf32> to vector<8xf32>
    %154 = vector.shape_cast %153 : vector<8xf32> to vector<8x1xf32>
    %155 = tpu.reciprocal %154 {approx = true} : vector<8x1xf32> -> vector<8x1xf32>
    %156 = vector.broadcast %155 : vector<8x1xf32> to vector<8x16xf32>
    %157 = arith.mulf %152, %156 : vector<8x16xf32>
    %158 = arith.truncf %157 : vector<8x16xf32> to vector<8x16xbf16>
    %159 = vector.extract_strided_slice %23 {offsets = [0, 20], sizes = [16, 4], strides = [1, 1]} : vector<16x32xbf16> to vector<16x4xbf16>
    %cst_57 = arith.constant dense<0.000000e+00> : vector<8x4xf32>
    %160 = tpu.matmul %158, %159, %cst_57 {dimension_numbers = #tpu.dot_dimension_numbers<[1], [0], [0], [1], [0, 0, 1, 1], [], []>} : vector<8x16xbf16>, vector<16x4xbf16>, vector<8x4xf32> -> vector<8x4xf32>
    %c0_58 = arith.constant 0 : index
    %c20 = arith.constant 20 : index
    %161 = vector.load %arg26[%c0_58, %c20] : memref<8x32xf32, #tpu.memory_space<vmem>>, vector<8x4xf32>
    tpu.vector_store %arg26[%c0_58, %c20], %160 {strides = array<i32>} : memref<8x32xf32, #tpu.memory_space<vmem>>, vector<8x4xf32>,
    %162 = vector.extract_strided_slice %21 {offsets = [0, 24], sizes = [8, 4], strides = [1, 1]} : vector<8x32xbf16> to vector<8x4xbf16>
    %163 = vector.extract_strided_slice %22 {offsets = [0, 24], sizes = [16, 4], strides = [1, 1]} : vector<16x32xbf16> to vector<16x4xbf16>
    %cst_59 = arith.constant dense<0.000000e+00> : vector<8x16xf32>
    %164 = tpu.matmul %162, %163, %cst_59 {dimension_numbers = #tpu.dot_dimension_numbers<[1], [1], [0], [0], [0, 0, 1, 0], [], []>} : vector<8x4xbf16>, vector<16x4xbf16>, vector<8x16xf32> -> vector<8x16xf32>
    %cst_60 = arith.constant 5.000000e-01 : f32
    %165 = vector.broadcast %cst_60 : f32 to vector<8x16xf32>
    %166 = arith.mulf %164, %165 : vector<8x16xf32>
    %167 = vector.extract_strided_slice %15 {offsets = [0, 6], sizes = [8, 1], strides = [1, 1]} : vector<8x8xf32> to vector<8x1xf32>
    %168 = vector.broadcast %167 : vector<8x1xf32> to vector<8x16xf32>
    %169 = arith.mulf %10, %168 : vector<8x16xf32>
    %170 = arith.addf %166, %169 : vector<8x16xf32>
    %cst_61 = arith.constant dense<0xFF800000> : vector<8xf32>
    %171 = vector.multi_reduction <maximumf>, %170, %cst_61 [1] : vector<8x16xf32> to vector<8xf32>
    %172 = vector.shape_cast %171 : vector<8xf32> to vector<8x1xf32>
    %173 = vector.broadcast %172 : vector<8x1xf32> to vector<8x16xf32>
    %174 = arith.subf %170, %173 : vector<8x16xf32>
    %175 = math.exp %174 : vector<8x16xf32>
    %cst_62 = arith.constant dense<0.000000e+00> : vector<8xf32>
    %176 = vector.multi_reduction <add>, %175, %cst_62 [1] : vector<8x16xf32> to vector<8xf32>
    %177 = vector.shape_cast %176 : vector<8xf32> to vector<8x1xf32>
    %178 = tpu.reciprocal %177 {approx = true} : vector<8x1xf32> -> vector<8x1xf32>
    %179 = vector.broadcast %178 : vector<8x1xf32> to vector<8x16xf32>
    %180 = arith.mulf %175, %179 : vector<8x16xf32>
    %181 = arith.truncf %180 : vector<8x16xf32> to vector<8x16xbf16>
    %182 = vector.extract_strided_slice %23 {offsets = [0, 24], sizes = [16, 4], strides = [1, 1]} : vector<16x32xbf16> to vector<16x4xbf16>
    %cst_63 = arith.constant dense<0.000000e+00> : vector<8x4xf32>
    %183 = tpu.matmul %181, %182, %cst_63 {dimension_numbers = #tpu.dot_dimension_numbers<[1], [0], [0], [1], [0, 0, 1, 1], [], []>} : vector<8x16xbf16>, vector<16x4xbf16>, vector<8x4xf32> -> vector<8x4xf32>
    %c0_64 = arith.constant 0 : index
    %c24 = arith.constant 24 : index
    %184 = vector.load %arg26[%c0_64, %c24] : memref<8x32xf32, #tpu.memory_space<vmem>>, vector<8x4xf32>
    tpu.vector_store %arg26[%c0_64, %c24], %183 {strides = array<i32>} : memref<8x32xf32, #tpu.memory_space<vmem>>, vector<8x4xf32>,
    %185 = vector.extract_strided_slice %21 {offsets = [0, 28], sizes = [8, 4], strides = [1, 1]} : vector<8x32xbf16> to vector<8x4xbf16>
    %186 = vector.extract_strided_slice %22 {offsets = [0, 28], sizes = [16, 4], strides = [1, 1]} : vector<16x32xbf16> to vector<16x4xbf16>
    %cst_65 = arith.constant dense<0.000000e+00> : vector<8x16xf32>
    %187 = tpu.matmul %185, %186, %cst_65 {dimension_numbers = #tpu.dot_dimension_numbers<[1], [1], [0], [0], [0, 0, 1, 0], [], []>} : vector<8x4xbf16>, vector<16x4xbf16>, vector<8x16xf32> -> vector<8x16xf32>
    %cst_66 = arith.constant 5.000000e-01 : f32
    %188 = vector.broadcast %cst_66 : f32 to vector<8x16xf32>
    %189 = arith.mulf %187, %188 : vector<8x16xf32>
    %190 = vector.extract_strided_slice %15 {offsets = [0, 7], sizes = [8, 1], strides = [1, 1]} : vector<8x8xf32> to vector<8x1xf32>
    %191 = vector.broadcast %190 : vector<8x1xf32> to vector<8x16xf32>
    %192 = arith.mulf %10, %191 : vector<8x16xf32>
    %193 = arith.addf %189, %192 : vector<8x16xf32>
    %cst_67 = arith.constant dense<0xFF800000> : vector<8xf32>
    %194 = vector.multi_reduction <maximumf>, %193, %cst_67 [1] : vector<8x16xf32> to vector<8xf32>
    %195 = vector.shape_cast %194 : vector<8xf32> to vector<8x1xf32>
    %196 = vector.broadcast %195 : vector<8x1xf32> to vector<8x16xf32>
    %197 = arith.subf %193, %196 : vector<8x16xf32>
    %198 = math.exp %197 : vector<8x16xf32>
    %cst_68 = arith.constant dense<0.000000e+00> : vector<8xf32>
    %199 = vector.multi_reduction <add>, %198, %cst_68 [1] : vector<8x16xf32> to vector<8xf32>
    %200 = vector.shape_cast %199 : vector<8xf32> to vector<8x1xf32>
    %201 = tpu.reciprocal %200 {approx = true} : vector<8x1xf32> -> vector<8x1xf32>
    %202 = vector.broadcast %201 : vector<8x1xf32> to vector<8x16xf32>
    %203 = arith.mulf %198, %202 : vector<8x16xf32>
    %204 = arith.truncf %203 : vector<8x16xf32> to vector<8x16xbf16>
    %205 = vector.extract_strided_slice %23 {offsets = [0, 28], sizes = [16, 4], strides = [1, 1]} : vector<16x32xbf16> to vector<16x4xbf16>
    %cst_69 = arith.constant dense<0.000000e+00> : vector<8x4xf32>
    %206 = tpu.matmul %204, %205, %cst_69 {dimension_numbers = #tpu.dot_dimension_numbers<[1], [0], [0], [1], [0, 0, 1, 1], [], []>} : vector<8x16xbf16>, vector<16x4xbf16>, vector<8x4xf32> -> vector<8x4xf32>
    %c0_70 = arith.constant 0 : index
    %c28 = arith.constant 28 : index
    %207 = vector.load %arg26[%c0_70, %c28] : memref<8x32xf32, #tpu.memory_space<vmem>>, vector<8x4xf32>
    tpu.vector_store %arg26[%c0_70, %c28], %206 {strides = array<i32>} : memref<8x32xf32, #tpu.memory_space<vmem>>, vector<8x4xf32>,
    %c0_71 = arith.constant 0 : index
    %c0_72 = arith.constant 0 : index
    %208 = vector.load %arg26[%c0_71, %c0_72] : memref<8x32xf32, #tpu.memory_space<vmem>>, vector<8x32xf32>
    %209 = arith.truncf %208 : vector<8x32xf32> to vector<8x32xbf16>
    %c0_73 = arith.constant 0 : index
    %c0_74 = arith.constant 0 : index
    %210 = vector.load %arg13[%c0_73, %c0_74] : memref<32x32xbf16, #tpu.memory_space<vmem>>, vector<32x32xbf16>
    %cst_75 = arith.constant dense<0.000000e+00> : vector<8x32xf32>
    %211 = tpu.matmul %209, %210, %cst_75 {dimension_numbers = #tpu.dot_dimension_numbers<[1], [0], [0], [1], [0, 0, 1, 1], [], []>} : vector<8x32xbf16>, vector<32x32xbf16>, vector<8x32xf32> -> vector<8x32xf32>
    %c0_76 = arith.constant 0 : index
    %c0_77 = arith.constant 0 : index
    %212 = vector.load %arg14[%c0_76, %c0_77] : memref<1x32xf32, #tpu.memory_space<vmem>>, vector<1x32xf32>
    %213 = vector.broadcast %212 : vector<1x32xf32> to vector<8x32xf32>
    %214 = arith.addf %211, %213 : vector<8x32xf32>
    %215 = arith.addf %4, %214 : vector<8x32xf32>
    %cst_78 = arith.constant dense<0.000000e+00> : vector<8xf32>
    %216 = vector.multi_reduction <add>, %215, %cst_78 [1] : vector<8x32xf32> to vector<8xf32>
    %217 = vector.shape_cast %216 : vector<8xf32> to vector<8x1xf32>
    %cst_79 = arith.constant 3.200000e+01 : f32
    %218 = vector.broadcast %cst_79 : f32 to vector<8x1xf32>
    %219 = arith.divf %217, %218 : vector<8x1xf32>
    %220 = vector.broadcast %219 : vector<8x1xf32> to vector<8x32xf32>
    %221 = arith.subf %215, %220 : vector<8x32xf32>
    %222 = arith.mulf %221, %221 : vector<8x32xf32>
    %cst_80 = arith.constant dense<0.000000e+00> : vector<8xf32>
    %223 = vector.multi_reduction <add>, %222, %cst_80 [1] : vector<8x32xf32> to vector<8xf32>
    %224 = vector.shape_cast %223 : vector<8xf32> to vector<8x1xf32>
    %cst_81 = arith.constant 3.200000e+01 : f32
    %225 = vector.broadcast %cst_81 : f32 to vector<8x1xf32>
    %226 = arith.divf %224, %225 : vector<8x1xf32>
    %227 = vector.broadcast %219 : vector<8x1xf32> to vector<8x32xf32>
    %228 = arith.subf %215, %227 : vector<8x32xf32>
    %cst_82 = arith.constant 9.99999974E-6 : f32
    %229 = vector.broadcast %cst_82 : f32 to vector<8x1xf32>
    %230 = arith.addf %226, %229 : vector<8x1xf32>
    %231 = math.rsqrt %230 : vector<8x1xf32>
    %232 = vector.broadcast %231 : vector<8x1xf32> to vector<8x32xf32>
    %233 = arith.mulf %228, %232 : vector<8x32xf32>
    %c0_83 = arith.constant 0 : index
    %c0_84 = arith.constant 0 : index
    %234 = vector.load %arg17[%c0_83, %c0_84] : memref<1x32xf32, #tpu.memory_space<vmem>>, vector<1x32xf32>
    %235 = vector.broadcast %234 : vector<1x32xf32> to vector<8x32xf32>
    %236 = arith.mulf %233, %235 : vector<8x32xf32>
    %c0_85 = arith.constant 0 : index
    %c0_86 = arith.constant 0 : index
    %237 = vector.load %arg18[%c0_85, %c0_86] : memref<1x32xf32, #tpu.memory_space<vmem>>, vector<1x32xf32>
    %238 = vector.broadcast %237 : vector<1x32xf32> to vector<8x32xf32>
    %239 = arith.addf %236, %238 : vector<8x32xf32>
    %240 = arith.truncf %239 : vector<8x32xf32> to vector<8x32xbf16>
    %c0_87 = arith.constant 0 : index
    %c0_88 = arith.constant 0 : index
    %241 = vector.load %arg19[%c0_87, %c0_88] : memref<32x64xbf16, #tpu.memory_space<vmem>>, vector<32x64xbf16>
    %cst_89 = arith.constant dense<0.000000e+00> : vector<8x64xf32>
    %242 = tpu.matmul %240, %241, %cst_89 {dimension_numbers = #tpu.dot_dimension_numbers<[1], [0], [0], [1], [0, 0, 1, 1], [], []>} : vector<8x32xbf16>, vector<32x64xbf16>, vector<8x64xf32> -> vector<8x64xf32>
    %c0_90 = arith.constant 0 : index
    %c0_91 = arith.constant 0 : index
    %243 = vector.load %arg20[%c0_90, %c0_91] : memref<1x64xf32, #tpu.memory_space<vmem>>, vector<1x64xf32>
    %244 = vector.broadcast %243 : vector<1x64xf32> to vector<8x64xf32>
    %245 = arith.addf %242, %244 : vector<8x64xf32>
    %cst_92 = arith.constant 0.000000e+00 : f32
    %246 = vector.broadcast %cst_92 : f32 to vector<8x64xf32>
    %247 = arith.maximumf %245, %246 : vector<8x64xf32>
    %248 = arith.truncf %247 : vector<8x64xf32> to vector<8x64xbf16>
    %c0_93 = arith.constant 0 : index
    %c0_94 = arith.constant 0 : index
    %249 = vector.load %arg21[%c0_93, %c0_94] : memref<64x32xbf16, #tpu.memory_space<vmem>>, vector<64x32xbf16>
    %cst_95 = arith.constant dense<0.000000e+00> : vector<8x32xf32>
    %250 = tpu.matmul %248, %249, %cst_95 {dimension_numbers = #tpu.dot_dimension_numbers<[1], [0], [0], [1], [0, 0, 1, 1], [], []>} : vector<8x64xbf16>, vector<64x32xbf16>, vector<8x32xf32> -> vector<8x32xf32>
    %c0_96 = arith.constant 0 : index
    %c0_97 = arith.constant 0 : index
    %251 = vector.load %arg22[%c0_96, %c0_97] : memref<1x32xf32, #tpu.memory_space<vmem>>, vector<1x32xf32>
    %252 = vector.broadcast %251 : vector<1x32xf32> to vector<8x32xf32>
    %253 = arith.addf %250, %252 : vector<8x32xf32>
    %254 = arith.addf %239, %253 : vector<8x32xf32>
    %cst_98 = arith.constant dense<0.000000e+00> : vector<8xf32>
    %255 = vector.multi_reduction <add>, %254, %cst_98 [1] : vector<8x32xf32> to vector<8xf32>
    %256 = vector.shape_cast %255 : vector<8xf32> to vector<8x1xf32>
    %cst_99 = arith.constant 3.200000e+01 : f32
    %257 = vector.broadcast %cst_99 : f32 to vector<8x1xf32>
    %258 = arith.divf %256, %257 : vector<8x1xf32>
    %259 = vector.broadcast %258 : vector<8x1xf32> to vector<8x32xf32>
    %260 = arith.subf %254, %259 : vector<8x32xf32>
    %261 = arith.mulf %260, %260 : vector<8x32xf32>
    %cst_100 = arith.constant dense<0.000000e+00> : vector<8xf32>
    %262 = vector.multi_reduction <add>, %261, %cst_100 [1] : vector<8x32xf32> to vector<8xf32>
    %263 = vector.shape_cast %262 : vector<8xf32> to vector<8x1xf32>
    %cst_101 = arith.constant 3.200000e+01 : f32
    %264 = vector.broadcast %cst_101 : f32 to vector<8x1xf32>
    %265 = arith.divf %263, %264 : vector<8x1xf32>
    %266 = vector.broadcast %258 : vector<8x1xf32> to vector<8x32xf32>
    %267 = arith.subf %254, %266 : vector<8x32xf32>
    %cst_102 = arith.constant 9.99999974E-6 : f32
    %268 = vector.broadcast %cst_102 : f32 to vector<8x1xf32>
    %269 = arith.addf %265, %268 : vector<8x1xf32>
    %270 = math.rsqrt %269 : vector<8x1xf32>
    %271 = vector.broadcast %270 : vector<8x1xf32> to vector<8x32xf32>
    %272 = arith.mulf %267, %271 : vector<8x32xf32>
    %c0_103 = arith.constant 0 : index
    %c0_104 = arith.constant 0 : index
    %273 = vector.load %arg23[%c0_103, %c0_104] : memref<1x32xf32, #tpu.memory_space<vmem>>, vector<1x32xf32>
    %274 = vector.broadcast %273 : vector<1x32xf32> to vector<8x32xf32>
    %275 = arith.mulf %272, %274 : vector<8x32xf32>
    %c0_105 = arith.constant 0 : index
    %c0_106 = arith.constant 0 : index
    %276 = vector.load %arg24[%c0_105, %c0_106] : memref<1x32xf32, #tpu.memory_space<vmem>>, vector<1x32xf32>
    %277 = vector.broadcast %276 : vector<1x32xf32> to vector<8x32xf32>
    %278 = arith.addf %275, %277 : vector<8x32xf32>
    %c0_107 = arith.constant 0 : index
    %c0_108 = arith.constant 0 : index
    %c0_109 = arith.constant 0 : index
    %279 = vector.load %arg25[%c0_107, %c0_108, %c0_109] : memref<1x8x32xf32, #tpu.memory_space<vmem>>, vector<1x8x32xf32>
    %280 = vector.shape_cast %279 : vector<1x8x32xf32> to vector<8x32xf32>
    %281 = vector.shape_cast %278 : vector<8x32xf32> to vector<1x8x32xf32>
    tpu.vector_store %arg25[%c0_107, %c0_108, %c0_109], %281 {strides = array<i32>} : memref<1x8x32xf32, #tpu.memory_space<vmem>>, vector<1x8x32xf32>,
    return
  }
  func.func @transform_0(%arg0: i32, %arg1: i32) -> (i32, i32, i32) {
    %c0_i32 = arith.constant 0 : i32
    %c0_i32_0 = arith.constant 0 : i32
    return %arg0, %arg1, %c0_i32 : i32, i32, i32
  }
  func.func @transform_1(%arg0: i32, %arg1: i32) -> (i32, i32, i32) {
    %c0_i32 = arith.constant 0 : i32
    %c0_i32_0 = arith.constant 0 : i32
    %c0_i32_1 = arith.constant 0 : i32
    return %arg0, %c0_i32, %c0_i32_0 : i32, i32, i32
  }
  func.func @transform_2(%arg0: i32, %arg1: i32) -> (i32, i32, i32) {
    %c0_i32 = arith.constant 0 : i32
    %c0_i32_0 = arith.constant 0 : i32
    return %arg0, %arg1, %c0_i32 : i32, i32, i32
  }
  func.func @transform_3(%arg0: i32, %arg1: i32) -> (i32, i32, i32) {
    %c0_i32 = arith.constant 0 : i32
    %c0_i32_0 = arith.constant 0 : i32
    %c0_i32_1 = arith.constant 0 : i32
    return %arg0, %c0_i32, %c0_i32_0 : i32, i32, i32
  }
  func.func @transform_4(%arg0: i32, %arg1: i32) -> (i32, i32, i32) {
    %c0_i32 = arith.constant 0 : i32
    %c0_i32_0 = arith.constant 0 : i32
    return %arg0, %arg1, %c0_i32 : i32, i32, i32
  }
  func.func @transform_5(%arg0: i32, %arg1: i32) -> (i32, i32) {
    %c0_i32 = arith.constant 0 : i32
    %c0_i32_0 = arith.constant 0 : i32
    %c0_i32_1 = arith.constant 0 : i32
    return %c0_i32, %c0_i32_0 : i32, i32
  }
  func.func @transform_6(%arg0: i32, %arg1: i32) -> (i32, i32) {
    %c0_i32 = arith.constant 0 : i32
    %c0_i32_0 = arith.constant 0 : i32
    %c0_i32_1 = arith.constant 0 : i32
    return %c0_i32, %c0_i32_0 : i32, i32
  }
  func.func @transform_7(%arg0: i32, %arg1: i32) -> (i32, i32) {
    %c0_i32 = arith.constant 0 : i32
    %c0_i32_0 = arith.constant 0 : i32
    %c0_i32_1 = arith.constant 0 : i32
    return %c0_i32, %c0_i32_0 : i32, i32
  }
  func.func @transform_8(%arg0: i32, %arg1: i32) -> (i32, i32) {
    %c0_i32 = arith.constant 0 : i32
    %c0_i32_0 = arith.constant 0 : i32
    %c0_i32_1 = arith.constant 0 : i32
    return %c0_i32, %c0_i32_0 : i32, i32
  }
  func.func @transform_9(%arg0: i32, %arg1: i32) -> (i32, i32) {
    %c0_i32 = arith.constant 0 : i32
    %c0_i32_0 = arith.constant 0 : i32
    %c0_i32_1 = arith.constant 0 : i32
    return %c0_i32, %c0_i32_0 : i32, i32
  }
  func.func @transform_10(%arg0: i32, %arg1: i32) -> (i32, i32) {
    %c0_i32 = arith.constant 0 : i32
    %c0_i32_0 = arith.constant 0 : i32
    %c0_i32_1 = arith.constant 0 : i32
    return %c0_i32, %c0_i32_0 : i32, i32
  }
  func.func @transform_11(%arg0: i32, %arg1: i32) -> (i32, i32) {
    %c0_i32 = arith.constant 0 : i32
    %c0_i32_0 = arith.constant 0 : i32
    %c0_i32_1 = arith.constant 0 : i32
    return %c0_i32, %c0_i32_0 : i32, i32
  }
  func.func @transform_12(%arg0: i32, %arg1: i32) -> (i32, i32) {
    %c0_i32 = arith.constant 0 : i32
    %c0_i32_0 = arith.constant 0 : i32
    %c0_i32_1 = arith.constant 0 : i32
    return %c0_i32, %c0_i32_0 : i32, i32
  }
  func.func @transform_13(%arg0: i32, %arg1: i32) -> (i32, i32) {
    %c0_i32 = arith.constant 0 : i32
    %c0_i32_0 = arith.constant 0 : i32
    %c0_i32_1 = arith.constant 0 : i32
    return %c0_i32, %c0_i32_0 : i32, i32
  }
  func.func @transform_14(%arg0: i32, %arg1: i32) -> (i32, i32) {
    %c0_i32 = arith.constant 0 : i32
    %c0_i32_0 = arith.constant 0 : i32
    %c0_i32_1 = arith.constant 0 : i32
    return %c0_i32, %c0_i32_0 : i32, i32
  }
  func.func @transform_15(%arg0: i32, %arg1: i32) -> (i32, i32) {
    %c0_i32 = arith.constant 0 : i32
    %c0_i32_0 = arith.constant 0 : i32
    %c0_i32_1 = arith.constant 0 : i32
    return %c0_i32, %c0_i32_0 : i32, i32
  }
  func.func @transform_16(%arg0: i32, %arg1: i32) -> (i32, i32) {
    %c0_i32 = arith.constant 0 : i32
    %c0_i32_0 = arith.constant 0 : i32
    %c0_i32_1 = arith.constant 0 : i32
    return %c0_i32, %c0_i32_0 : i32, i32
  }
  func.func @transform_17(%arg0: i32, %arg1: i32) -> (i32, i32) {
    %c0_i32 = arith.constant 0 : i32
    %c0_i32_0 = arith.constant 0 : i32
    %c0_i32_1 = arith.constant 0 : i32
    return %c0_i32, %c0_i32_0 : i32, i32
  }
  func.func @transform_18(%arg0: i32, %arg1: i32) -> (i32, i32) {
    %c0_i32 = arith.constant 0 : i32
    %c0_i32_0 = arith.constant 0 : i32
    %c0_i32_1 = arith.constant 0 : i32
    return %c0_i32, %c0_i32_0 : i32, i32
  }
  func.func @transform_19(%arg0: i32, %arg1: i32) -> (i32, i32) {
    %c0_i32 = arith.constant 0 : i32
    %c0_i32_0 = arith.constant 0 : i32
    %c0_i32_1 = arith.constant 0 : i32
    return %c0_i32, %c0_i32_0 : i32, i32
  }
  func.func @transform_20(%arg0: i32, %arg1: i32) -> (i32, i32) {
    %c0_i32 = arith.constant 0 : i32
    %c0_i32_0 = arith.constant 0 : i32
    %c0_i32_1 = arith.constant 0 : i32
    return %c0_i32, %c0_i32_0 : i32, i32
  }
  func.func @transform_21(%arg0: i32, %arg1: i32) -> (i32, i32) {
    %c0_i32 = arith.constant 0 : i32
    %c0_i32_0 = arith.constant 0 : i32
    %c0_i32_1 = arith.constant 0 : i32
    return %c0_i32, %c0_i32_0 : i32, i32
  }
  func.func @transform_22(%arg0: i32, %arg1: i32) -> (i32, i32) {
    %c0_i32 = arith.constant 0 : i32
    %c0_i32_0 = arith.constant 0 : i32
    %c0_i32_1 = arith.constant 0 : i32
    return %c0_i32, %c0_i32_0 : i32, i32
  }
  func.func @transform_23(%arg0: i32, %arg1: i32) -> (i32, i32, i32) {
    %c0_i32 = arith.constant 0 : i32
    %c0_i32_0 = arith.constant 0 : i32
    return %arg0, %arg1, %c0_i32 : i32, i32, i32
  }
}

</mosaic_0001>

<llo_original>
// kernel: tpu_custom_call.1
$region0: #{tpu_custom_call.1}
  #allocation0 [shape = 'u32[]', space=smem, size = 0x4, offset = 0x4, fixed_abs, tag = 'smem constant byte address 0x4 - core index']
  #allocation1 [shape = 'u32[72,128]{1,0:T(1,128)}', space=vmem, size = 0x9000, scoped, tag = 'internal scratch']
  #allocation2 [shape = 'f32[8,32]{1,0:T(8,128)}', space=vmem, size = 0x1000, scoped, tag = 'scratch operand']
  #allocation3 [shape = 'bf16[16,32]{1,0:T(8,128)(2,1)}', space=vmem, size = 0x1000, scoped, tag = 'scratch operand']
  #allocation4 [shape = 'bf16[16,32]{1,0:T(8,128)(2,1)}', space=vmem, size = 0x1000, scoped, tag = 'scratch operand']
  %s0 = inlined_call_operand.vmem [shape: f32[2,16,32], index: 0, kind: input, shape index: {}]
  %s1 = inlined_call_operand.vmem [shape: f32[2,16,32], index: 1, kind: input, shape index: {}]
  %s2 = inlined_call_operand.hbm [shape: f32[2,16,32], index: 2, kind: input, shape index: {}]
  %s3 = inlined_call_operand.hbm [shape: f32[2,16,32], index: 3, kind: input, shape index: {}]
  %s4 = inlined_call_operand.hbm [shape: f32[2,16,16], index: 4, kind: input, shape index: {}]
  %s5 = inlined_call_operand.hbm [shape: bf16[32,32], index: 5, kind: input, shape index: {}]
  %s6 = inlined_call_operand.vmem [shape: f32[1,32], index: 6, kind: input, shape index: {}]
  %s7 = inlined_call_operand.hbm [shape: bf16[32,32], index: 7, kind: input, shape index: {}]
  %s8 = inlined_call_operand.vmem [shape: f32[1,32], index: 8, kind: input, shape index: {}]
  %s9 = inlined_call_operand.hbm [shape: bf16[32,32], index: 9, kind: input, shape index: {}]
  %s10 = inlined_call_operand.vmem [shape: f32[1,32], index: 10, kind: input, shape index: {}]
  %s11 = inlined_call_operand.hbm [shape: bf16[32,32], index: 11, kind: input, shape index: {}]
  %s12 = inlined_call_operand.vmem [shape: f32[1,32], index: 12, kind: input, shape index: {}]
  %s13 = inlined_call_operand.vmem [shape: f32[32,8], index: 13, kind: input, shape index: {}]
  %s14 = inlined_call_operand.vmem [shape: f32[1,8], index: 14, kind: input, shape index: {}]
  %s15 = inlined_call_operand.vmem [shape: f32[1,32], index: 15, kind: input, shape index: {}]
  %s16 = inlined_call_operand.vmem [shape: f32[1,32], index: 16, kind: input, shape index: {}]
  %s17 = inlined_call_operand.hbm [shape: bf16[32,64], index: 17, kind: input, shape index: {}]
  %s18 = inlined_call_operand.vmem [shape: f32[1,64], index: 18, kind: input, shape index: {}]
  %s19 = inlined_call_operand.vmem [shape: bf16[64,32], index: 19, kind: input, shape index: {}]
  %s20 = inlined_call_operand.vmem [shape: f32[1,32], index: 20, kind: input, shape index: {}]
  %s21 = inlined_call_operand.vmem [shape: f32[1,32], index: 21, kind: input, shape index: {}]
  %s22 = inlined_call_operand.vmem [shape: f32[1,32], index: 22, kind: input, shape index: {}]
  %s23 = inlined_call_operand.hbm [shape: f32[2,16,32], index: 23, kind: output, shape index: {}]
  %s24 = sld [smem:[#allocation0]]
  $region161: #{tpu_custom_call.1} parent=0
    _
  %s26 = ssub.s32 1, %s24
  %s27 = scalar_select 0, %s26, %s24
  $region1: #{tpu_custom_call.1} parent=0
    #allocation5 [shape = 'u8[8192]{0}', space=vmem, size = 0x2000, scoped, tag = 'input window, operand 2']
    #allocation6 [shape = 's32[2]{0}', space=sflag, size = 0x8, scoped, tag = 'scoped memory for tpu_custom_call.1']
    #allocation7 [shape = 's32[2]{0}', space=sflag, size = 0x8, scoped, tag = 'scoped memory for tpu_custom_call.1']
    #allocation8 [shape = 'u8[16384]{0}', space=vmem, size = 0x4000, scoped, tag = 'input window, operand 3']
    #allocation9 [shape = 's32[2]{0}', space=sflag, size = 0x8, scoped, tag = 'scoped memory for tpu_custom_call.1']
    #allocation10 [shape = 'u8[8192]{0}', space=vmem, size = 0x2000, scoped, tag = 'input window, operand 4']
    #allocation11 [shape = 'u8[8192]{0}', space=vmem, size = 0x2000, scoped, tag = 'input window, operand 5, single buffered']
    #allocation12 [shape = 's32[1]{0}', space=sflag, size = 0x4, scoped, tag = 'scoped memory for tpu_custom_call.1']
    #allocation13 [shape = 'u8[8192]{0}', space=vmem, size = 0x2000, scoped, tag = 'input window, operand 7, single buffered']
    #allocation14 [shape = 'u8[8192]{0}', space=vmem, size = 0x2000, scoped, tag = 'input window, operand 9, single buffered']
    #allocation15 [shape = 's32[1]{0}', space=sflag, size = 0x4, scoped, tag = 'scoped memory for tpu_custom_call.1']
    #allocation16 [shape = 'u8[8192]{0}', space=vmem, size = 0x2000, scoped, tag = 'input window, operand 11, single buffered']
    #allocation17 [shape = 'u8[8192]{0}', space=vmem, size = 0x2000, scoped, tag = 'input window, operand 17, single buffered']
    #allocation18 [shape = 's32[1]{0}', space=sflag, size = 0x4, scoped, tag = 'scoped memory for tpu_custom_call.1']
    #allocation19 [shape = 'u8[8192]{0}', space=vmem, size = 0x2000, scoped, tag = 'output window, operand 0']
    %28 = vsyncpa [#allocation6], 0
    %s29 = scalar_lea.sflag [#allocation6], 1
    %30 = vsyncpa %s29, 0
    %31 = vsyncpa [#allocation9], 0
    %s32 = scalar_lea.sflag [#allocation9], 1
    %33 = vsyncpa %s32, 0
    %34 = vsyncpa [#allocation12], 0
    %35 = vsyncpa [#allocation15], 0
    %36 = vsyncpa [#allocation18], 0
    %37 = vsyncpa [#allocation7], 0
    %s38 = scalar_lea.sflag [#allocation7], 1
    %39 = vsyncpa %s38, 0
    loop: start=0, step=1, limit=6
    $region2: #{tpu_custom_call.1} parent=1 // loop_pre_header
      _
    $region3: #{tpu_custom_call.1} parent=1 // loop_header
      %s41 = sphi 0, %s45
      %p42 = scmp.ge.s32.totalorder %s41, 6
      %s48 = sphi 0, %s60
      %s49 = sphi 0, %s56
      %s50 = sphi 0, %s48
      %s51 = sphi 0, %s49
      %s52 = sphi 0, %s50
      %s53 = sphi 0, %s51
      %s65 = sphi 0, %s67
      %s68 = sphi 0, %s65
      %s69 = sphi 0, %s68
      %s85 = sphi 0, %s69
      %s91 = sphi 0, %s93
      %s94 = sphi 0, %s91
      %s95 = sphi 0, %s94
      %s111 = sphi 0, %s95
      %s119 = sphi 0, %s121
      %s122 = sphi 0, %s119
      %s123 = sphi 0, %s122
      %s139 = sphi 0, %s123
      %s145 = sphi 0, %s147
      %s148 = sphi 0, %s145
      %s149 = sphi 0, %s148
      %s165 = sphi 0, %s149
      %s173 = sphi 0, %s175
      %s176 = sphi 0, %s173
      %s177 = sphi 0, %s176
      %s193 = sphi 0, %s177
      %s197 = sphi 0, %s197
      %s199 = sphi 0, %s197
      %s200 = sphi 0, %s199
      %s214 = sphi 0, %s200
      %s218 = sphi 0, %s218
      %s220 = sphi 0, %s218
      %s221 = sphi 0, %s220
      %s235 = sphi 0, %s221
      %s239 = sphi 0, %s239
      %s241 = sphi 0, %s239
      %s242 = sphi 0, %s241
      %s256 = sphi 0, %s242
      %s260 = sphi 0, %s260
      %s262 = sphi 0, %s260
      %s263 = sphi 0, %s262
      %s277 = sphi 0, %s263
      %s281 = sphi 0, %s281
      %s283 = sphi 0, %s281
      %s284 = sphi 0, %s283
      %s298 = sphi 0, %s284
      %s302 = sphi 0, %s302
      %s304 = sphi 0, %s302
      %s305 = sphi 0, %s304
      %s319 = sphi 0, %s305
      %s323 = sphi 0, %s323
      %s325 = sphi 0, %s323
      %s326 = sphi 0, %s325
      %s340 = sphi 0, %s326
      %s344 = sphi 0, %s344
      %s346 = sphi 0, %s344
      %s347 = sphi 0, %s346
      %s361 = sphi 0, %s347
      %s365 = sphi 0, %s365
      %s367 = sphi 0, %s365
      %s368 = sphi 0, %s367
      %s382 = sphi 0, %s368
      %s386 = sphi 0, %s386
      %s388 = sphi 0, %s386
      %s389 = sphi 0, %s388
      %s403 = sphi 0, %s389
      %s407 = sphi 0, %s407
      %s409 = sphi 0, %s407
      %s410 = sphi 0, %s409
      %s424 = sphi 0, %s410
      %s428 = sphi 0, %s428
      %s430 = sphi 0, %s428
      %s431 = sphi 0, %s430
      %s445 = sphi 0, %s431
      %s449 = sphi 0, %s449
      %s451 = sphi 0, %s449
      %s452 = sphi 0, %s451
      %s466 = sphi 0, %s452
      %s470 = sphi 0, %s470
      %s472 = sphi 0, %s470
      %s473 = sphi 0, %s472
      %s487 = sphi 0, %s473
      %s491 = sphi 0, %s491
      %s493 = sphi 0, %s491
      %s494 = sphi 0, %s493
      %s508 = sphi 0, %s494
      %s512 = sphi 0, %s512
      %s514 = sphi 0, %s512
      %s515 = sphi 0, %s514
      %s529 = sphi 0, %s515
      %s533 = sphi 0, %s533
      %s535 = sphi 0, %s533
      %s536 = sphi 0, %s535
      %s550 = sphi 0, %s536
      %s554 = sphi 0, %s554
      %s556 = sphi 0, %s554
      %s557 = sphi 0, %s556
      %s571 = sphi 0, %s557
      %s579 = sphi 0, %s581
      %s582 = sphi 0, %s579
      %s583 = sphi 0, %s582
      %s599 = sphi 0, %s583
    $region4: #{tpu_custom_call.1} parent=1 // loop_header_branch
      %44 = sbr.rel (%p42) target = $region8
    $region5: #{tpu_custom_call.1} parent=1 // loop_body
      %s46 = ssub.s32 %s41, 1
      %s47 = ssub.s32 %s41, 2
      %s54 = sadd.s32 1, %s49
      %p55 = scmp.ge.s32.totalorder %s54, 2
      %s56 = scalar_select %p55, 0, %s54
      %s57 = sadd.s32 1, %s48
      %s58 = scalar_select %p55, %s57, %s48
      %p59 = scmp.ge.s32.totalorder %s58, 2
      %s60 = scalar_select %p59, 0, %s58
      %s61 = ssub.s32 %s48, %s60
      %s62 = ssub.s32 %s49, %s56
      %s63 = sor.u32 %s61, %s62
      %p64 = scmp.eq.s32.totalorder %s63, 0
      %s66 = sadd.s32 %s65, 1
      %s67 = scalar_select %p64, %s65, %s66
      %p70 = pneg %p64
      %p71 = scmp.eq.s32.totalorder %s41, 3
      %p72 = por %p70, %p71
      %p73 = scmp.ne.s32.totalorder %s65, %s68
      %p74 = scmp.eq.s32.totalorder %s41, 0
      %p75 = por %p73, %p74
      %p76 = scmp.ne.s32.totalorder %s65, %s68
      %p77 = scmp.eq.s32.totalorder %s46, 3
      %p78 = por %p76, %p77
      %p79 = scmp.ne.s32.totalorder %s68, %s69
      %p80 = scmp.eq.s32.totalorder %s46, 0
      %p81 = por %p79, %p80
      %p82 = scmp.ne.s32.totalorder %s68, %s69
      %p83 = scmp.eq.s32.totalorder %s47, 3
      %p84 = por %p82, %p83
      %p86 = scmp.ne.s32.totalorder %s69, %s85
      %p87 = scmp.eq.s32.totalorder %s47, 0
      %p88 = por %p86, %p87
      %s89 = ssub.s32 %s48, %s60
      %p90 = scmp.eq.s32.totalorder %s89, 0
      %s92 = sadd.s32 %s91, 1
      %s93 = scalar_select %p90, %s91, %s92
      %p96 = pneg %p90
      %p97 = scmp.eq.s32.totalorder %s41, 3
      %p98 = por %p96, %p97
      %p99 = scmp.ne.s32.totalorder %s91, %s94
      %p100 = scmp.eq.s32.totalorder %s41, 0
      %p101 = por %p99, %p100
      %p102 = scmp.ne.s32.totalorder %s91, %s94
      %p103 = scmp.eq.s32.totalorder %s46, 3
      %p104 = por %p102, %p103
      %p105 = scmp.ne.s32.totalorder %s94, %s95
      %p106 = scmp.eq.s32.totalorder %s46, 0
      %p107 = por %p105, %p106
      %p108 = scmp.ne.s32.totalorder %s94, %s95
      %p109 = scmp.eq.s32.totalorder %s47, 3
      %p110 = por %p108, %p109
      %p112 = scmp.ne.s32.totalorder %s95, %s111
      %p113 = scmp.eq.s32.totalorder %s47, 0
      %p114 = por %p112, %p113
      %s115 = ssub.s32 %s48, %s60
      %s116 = ssub.s32 %s49, %s56
      %s117 = sor.u32 %s115, %s116
      %p118 = scmp.eq.s32.totalorder %s117, 0
      %s120 = sadd.s32 %s119, 1
      %s121 = scalar_select %p118, %s119, %s120
      %p124 = pneg %p118
      %p125 = scmp.eq.s32.totalorder %s41, 3
      %p126 = por %p124, %p125
      %p127 = scmp.ne.s32.totalorder %s119, %s122
      %p128 = scmp.eq.s32.totalorder %s41, 0
      %p129 = por %p127, %p128
      %p130 = scmp.ne.s32.totalorder %s119, %s122
      %p131 = scmp.eq.s32.totalorder %s46, 3
      %p132 = por %p130, %p131
      %p133 = scmp.ne.s32.totalorder %s122, %s123
      %p134 = scmp.eq.s32.totalorder %s46, 0
      %p135 = por %p133, %p134
      %p136 = scmp.ne.s32.totalorder %s122, %s123
      %p137 = scmp.eq.s32.totalorder %s47, 3
      %p138 = por %p136, %p137
      %p140 = scmp.ne.s32.totalorder %s123, %s139
      %p141 = scmp.eq.s32.totalorder %s47, 0
      %p142 = por %p140, %p141
      %s143 = ssub.s32 %s48, %s60
      %p144 = scmp.eq.s32.totalorder %s143, 0
      %s146 = sadd.s32 %s145, 1
      %s147 = scalar_select %p144, %s145, %s146
      %p150 = pneg %p144
      %p151 = scmp.eq.s32.totalorder %s41, 3
      %p152 = por %p150, %p151
      %p153 = scmp.ne.s32.totalorder %s145, %s148
      %p154 = scmp.eq.s32.totalorder %s41, 0
      %p155 = por %p153, %p154
      %p156 = scmp.ne.s32.totalorder %s145, %s148
      %p157 = scmp.eq.s32.totalorder %s46, 3
      %p158 = por %p156, %p157
      %p159 = scmp.ne.s32.totalorder %s148, %s149
      %p160 = scmp.eq.s32.totalorder %s46, 0
      %p161 = por %p159, %p160
      %p162 = scmp.ne.s32.totalorder %s148, %s149
      %p163 = scmp.eq.s32.totalorder %s47, 3
      %p164 = por %p162, %p163
      %p166 = scmp.ne.s32.totalorder %s149, %s165
      %p167 = scmp.eq.s32.totalorder %s47, 0
      %p168 = por %p166, %p167
      %s169 = ssub.s32 %s48, %s60
      %s170 = ssub.s32 %s49, %s56
      %s171 = sor.u32 %s169, %s170
      %p172 = scmp.eq.s32.totalorder %s171, 0
      %s174 = sadd.s32 %s173, 1
      %s175 = scalar_select %p172, %s173, %s174
      %p178 = pneg %p172
      %p179 = scmp.eq.s32.totalorder %s41, 3
      %p180 = por %p178, %p179
      %p181 = scmp.ne.s32.totalorder %s173, %s176
      %p182 = scmp.eq.s32.totalorder %s41, 0
      %p183 = por %p181, %p182
      %p184 = scmp.ne.s32.totalorder %s173, %s176
      %p185 = scmp.eq.s32.totalorder %s46, 3
      %p186 = por %p184, %p185
      %p187 = scmp.ne.s32.totalorder %s176, %s177
      %p188 = scmp.eq.s32.totalorder %s46, 0
      %p189 = por %p187, %p188
      %p190 = scmp.ne.s32.totalorder %s176, %s177
      %p191 = scmp.eq.s32.totalorder %s47, 3
      %p192 = por %p190, %p191
      %p194 = scmp.ne.s32.totalorder %s177, %s193
      %p195 = scmp.eq.s32.totalorder %s47, 0
      %p196 = por %p194, %p195
      %s198 = sadd.s32 %s197, 1
      %p201 = scmp.eq.s32.totalorder %s41, 3
      %p202 = scmp.ne.s32.totalorder %s197, %s199
      %p203 = scmp.eq.s32.totalorder %s41, 0
      %p204 = por %p202, %p203
      %p205 = scmp.ne.s32.totalorder %s197, %s199
      %p206 = scmp.eq.s32.totalorder %s46, 3
      %p207 = por %p205, %p206
      %p208 = scmp.ne.s32.totalorder %s199, %s200
      %p209 = scmp.eq.s32.totalorder %s46, 0
      %p210 = por %p208, %p209
      %p211 = scmp.ne.s32.totalorder %s199, %s200
      %p212 = scmp.eq.s32.totalorder %s47, 3
      %p213 = por %p211, %p212
      %p215 = scmp.ne.s32.totalorder %s200, %s214
      %p216 = scmp.eq.s32.totalorder %s47, 0
      %p217 = por %p215, %p216
      %s219 = sadd.s32 %s218, 1
      %p222 = scmp.eq.s32.totalorder %s41, 3
      %p223 = scmp.ne.s32.totalorder %s218, %s220
      %p224 = scmp.eq.s32.totalorder %s41, 0
      %p225 = por %p223, %p224
      %p226 = scmp.ne.s32.totalorder %s218, %s220
      %p227 = scmp.eq.s32.totalorder %s46, 3
      %p228 = por %p226, %p227
      %p229 = scmp.ne.s32.totalorder %s220, %s221
      %p230 = scmp.eq.s32.totalorder %s46, 0
      %p231 = por %p229, %p230
      %p232 = scmp.ne.s32.totalorder %s220, %s221
      %p233 = scmp.eq.s32.totalorder %s47, 3
      %p234 = por %p232, %p233
      %p236 = scmp.ne.s32.totalorder %s221, %s235
      %p237 = scmp.eq.s32.totalorder %s47, 0
      %p238 = por %p236, %p237
      %s240 = sadd.s32 %s239, 1
      %p243 = scmp.eq.s32.totalorder %s41, 3
      %p244 = scmp.ne.s32.totalorder %s239, %s241
      %p245 = scmp.eq.s32.totalorder %s41, 0
      %p246 = por %p244, %p245
      %p247 = scmp.ne.s32.totalorder %s239, %s241
      %p248 = scmp.eq.s32.totalorder %s46, 3
      %p249 = por %p247, %p248
      %p250 = scmp.ne.s32.totalorder %s241, %s242
      %p251 = scmp.eq.s32.totalorder %s46, 0
      %p252 = por %p250, %p251
      %p253 = scmp.ne.s32.totalorder %s241, %s242
      %p254 = scmp.eq.s32.totalorder %s47, 3
      %p255 = por %p253, %p254
      %p257 = scmp.ne.s32.totalorder %s242, %s256
      %p258 = scmp.eq.s32.totalorder %s47, 0
      %p259 = por %p257, %p258
      %s261 = sadd.s32 %s260, 1
      %p264 = scmp.eq.s32.totalorder %s41, 3
      %p265 = scmp.ne.s32.totalorder %s260, %s262
      %p266 = scmp.eq.s32.totalorder %s41, 0
      %p267 = por %p265, %p266
      %p268 = scmp.ne.s32.totalorder %s260, %s262
      %p269 = scmp.eq.s32.totalorder %s46, 3
      %p270 = por %p268, %p269
      %p271 = scmp.ne.s32.totalorder %s262, %s263
      %p272 = scmp.eq.s32.totalorder %s46, 0
      %p273 = por %p271, %p272
      %p274 = scmp.ne.s32.totalorder %s262, %s263
      %p275 = scmp.eq.s32.totalorder %s47, 3
      %p276 = por %p274, %p275
      %p278 = scmp.ne.s32.totalorder %s263, %s277
      %p279 = scmp.eq.s32.totalorder %s47, 0
      %p280 = por %p278, %p279
      %s282 = sadd.s32 %s281, 1
      %p285 = scmp.eq.s32.totalorder %s41, 3
      %p286 = scmp.ne.s32.totalorder %s281, %s283
      %p287 = scmp.eq.s32.totalorder %s41, 0
      %p288 = por %p286, %p287
      %p289 = scmp.ne.s32.totalorder %s281, %s283
      %p290 = scmp.eq.s32.totalorder %s46, 3
      %p291 = por %p289, %p290
      %p292 = scmp.ne.s32.totalorder %s283, %s284
      %p293 = scmp.eq.s32.totalorder %s46, 0
      %p294 = por %p292, %p293
      %p295 = scmp.ne.s32.totalorder %s283, %s284
      %p296 = scmp.eq.s32.totalorder %s47, 3
      %p297 = por %p295, %p296
      %p299 = scmp.ne.s32.totalorder %s284, %s298
      %p300 = scmp.eq.s32.totalorder %s47, 0
      %p301 = por %p299, %p300
      %s303 = sadd.s32 %s302, 1
      %p306 = scmp.eq.s32.totalorder %s41, 3
      %p307 = scmp.ne.s32.totalorder %s302, %s304
      %p308 = scmp.eq.s32.totalorder %s41, 0
      %p309 = por %p307, %p308
      %p310 = scmp.ne.s32.totalorder %s302, %s304
      %p311 = scmp.eq.s32.totalorder %s46, 3
      %p312 = por %p310, %p311
      %p313 = scmp.ne.s32.totalorder %s304, %s305
      %p314 = scmp.eq.s32.totalorder %s46, 0
      %p315 = por %p313, %p314
      %p316 = scmp.ne.s32.totalorder %s304, %s305
      %p317 = scmp.eq.s32.totalorder %s47, 3
      %p318 = por %p316, %p317
      %p320 = scmp.ne.s32.totalorder %s305, %s319
      %p321 = scmp.eq.s32.totalorder %s47, 0
      %p322 = por %p320, %p321
      %s324 = sadd.s32 %s323, 1
      %p327 = scmp.eq.s32.totalorder %s41, 3
      %p328 = scmp.ne.s32.totalorder %s323, %s325
      %p329 = scmp.eq.s32.totalorder %s41, 0
      %p330 = por %p328, %p329
      %p331 = scmp.ne.s32.totalorder %s323, %s325
      %p332 = scmp.eq.s32.totalorder %s46, 3
      %p333 = por %p331, %p332
      %p334 = scmp.ne.s32.totalorder %s325, %s326
      %p335 = scmp.eq.s32.totalorder %s46, 0
      %p336 = por %p334, %p335
      %p337 = scmp.ne.s32.totalorder %s325, %s326
      %p338 = scmp.eq.s32.totalorder %s47, 3
      %p339 = por %p337, %p338
      %p341 = scmp.ne.s32.totalorder %s326, %s340
      %p342 = scmp.eq.s32.totalorder %s47, 0
      %p343 = por %p341, %p342
      %s345 = sadd.s32 %s344, 1
      %p348 = scmp.eq.s32.totalorder %s41, 3
      %p349 = scmp.ne.s32.totalorder %s344, %s346
      %p350 = scmp.eq.s32.totalorder %s41, 0
      %p351 = por %p349, %p350
      %p352 = scmp.ne.s32.totalorder %s344, %s346
      %p353 = scmp.eq.s32.totalorder %s46, 3
      %p354 = por %p352, %p353
      %p355 = scmp.ne.s32.totalorder %s346, %s347
      %p356 = scmp.eq.s32.totalorder %s46, 0
      %p357 = por %p355, %p356
      %p358 = scmp.ne.s32.totalorder %s346, %s347
      %p359 = scmp.eq.s32.totalorder %s47, 3
      %p360 = por %p358, %p359
      %p362 = scmp.ne.s32.totalorder %s347, %s361
      %p363 = scmp.eq.s32.totalorder %s47, 0
      %p364 = por %p362, %p363
      %s366 = sadd.s32 %s365, 1
      %p369 = scmp.eq.s32.totalorder %s41, 3
      %p370 = scmp.ne.s32.totalorder %s365, %s367
      %p371 = scmp.eq.s32.totalorder %s41, 0
      %p372 = por %p370, %p371
      %p373 = scmp.ne.s32.totalorder %s365, %s367
      %p374 = scmp.eq.s32.totalorder %s46, 3
      %p375 = por %p373, %p374
      %p376 = scmp.ne.s32.totalorder %s367, %s368
      %p377 = scmp.eq.s32.totalorder %s46, 0
      %p378 = por %p376, %p377
      %p379 = scmp.ne.s32.totalorder %s367, %s368
      %p380 = scmp.eq.s32.totalorder %s47, 3
      %p381 = por %p379, %p380
      %p383 = scmp.ne.s32.totalorder %s368, %s382
      %p384 = scmp.eq.s32.totalorder %s47, 0
      %p385 = por %p383, %p384
      %s387 = sadd.s32 %s386, 1
      %p390 = scmp.eq.s32.totalorder %s41, 3
      %p391 = scmp.ne.s32.totalorder %s386, %s388
      %p392 = scmp.eq.s32.totalorder %s41, 0
      %p393 = por %p391, %p392
      %p394 = scmp.ne.s32.totalorder %s386, %s388
      %p395 = scmp.eq.s32.totalorder %s46, 3
      %p396 = por %p394, %p395
      %p397 = scmp.ne.s32.totalorder %s388, %s389
      %p398 = scmp.eq.s32.totalorder %s46, 0
      %p399 = por %p397, %p398
      %p400 = scmp.ne.s32.totalorder %s388, %s389
      %p401 = scmp.eq.s32.totalorder %s47, 3
      %p402 = por %p400, %p401
      %p404 = scmp.ne.s32.totalorder %s389, %s403
      %p405 = scmp.eq.s32.totalorder %s47, 0
      %p406 = por %p404, %p405
      %s408 = sadd.s32 %s407, 1
      %p411 = scmp.eq.s32.totalorder %s41, 3
      %p412 = scmp.ne.s32.totalorder %s407, %s409
      %p413 = scmp.eq.s32.totalorder %s41, 0
      %p414 = por %p412, %p413
      %p415 = scmp.ne.s32.totalorder %s407, %s409
      %p416 = scmp.eq.s32.totalorder %s46, 3
      %p417 = por %p415, %p416
      %p418 = scmp.ne.s32.totalorder %s409, %s410
      %p419 = scmp.eq.s32.totalorder %s46, 0
      %p420 = por %p418, %p419
      %p421 = scmp.ne.s32.totalorder %s409, %s410
      %p422 = scmp.eq.s32.totalorder %s47, 3
      %p423 = por %p421, %p422
      %p425 = scmp.ne.s32.totalorder %s410, %s424
      %p426 = scmp.eq.s32.totalorder %s47, 0
      %p427 = por %p425, %p426
      %s429 = sadd.s32 %s428, 1
      %p432 = scmp.eq.s32.totalorder %s41, 3
      %p433 = scmp.ne.s32.totalorder %s428, %s430
      %p434 = scmp.eq.s32.totalorder %s41, 0
      %p435 = por %p433, %p434
      %p436 = scmp.ne.s32.totalorder %s428, %s430
      %p437 = scmp.eq.s32.totalorder %s46, 3
      %p438 = por %p436, %p437
      %p439 = scmp.ne.s32.totalorder %s430, %s431
      %p440 = scmp.eq.s32.totalorder %s46, 0
      %p441 = por %p439, %p440
      %p442 = scmp.ne.s32.totalorder %s430, %s431
      %p443 = scmp.eq.s32.totalorder %s47, 3
      %p444 = por %p442, %p443
      %p446 = scmp.ne.s32.totalorder %s431, %s445
      %p447 = scmp.eq.s32.totalorder %s47, 0
      %p448 = por %p446, %p447
      %s450 = sadd.s32 %s449, 1
      %p453 = scmp.eq.s32.totalorder %s41, 3
      %p454 = scmp.ne.s32.totalorder %s449, %s451
      %p455 = scmp.eq.s32.totalorder %s41, 0
      %p456 = por %p454, %p455
      %p457 = scmp.ne.s32.totalorder %s449, %s451
      %p458 = scmp.eq.s32.totalorder %s46, 3
      %p459 = por %p457, %p458
      %p460 = scmp.ne.s32.totalorder %s451, %s452
      %p461 = scmp.eq.s32.totalorder %s46, 0
      %p462 = por %p460, %p461
      %p463 = scmp.ne.s32.totalorder %s451, %s452
      %p464 = scmp.eq.s32.totalorder %s47, 3
      %p465 = por %p463, %p464
      %p467 = scmp.ne.s32.totalorder %s452, %s466
      %p468 = scmp.eq.s32.totalorder %s47, 0
      %p469 = por %p467, %p468
      %s471 = sadd.s32 %s470, 1
      %p474 = scmp.eq.s32.totalorder %s41, 3
      %p475 = scmp.ne.s32.totalorder %s470, %s472
      %p476 = scmp.eq.s32.totalorder %s41, 0
      %p477 = por %p475, %p476
      %p478 = scmp.ne.s32.totalorder %s470, %s472
      %p479 = scmp.eq.s32.totalorder %s46, 3
      %p480 = por %p478, %p479
      %p481 = scmp.ne.s32.totalorder %s472, %s473
      %p482 = scmp.eq.s32.totalorder %s46, 0
      %p483 = por %p481, %p482
      %p484 = scmp.ne.s32.totalorder %s472, %s473
      %p485 = scmp.eq.s32.totalorder %s47, 3
      %p486 = por %p484, %p485
      %p488 = scmp.ne.s32.totalorder %s473, %s487
      %p489 = scmp.eq.s32.totalorder %s47, 0
      %p490 = por %p488, %p489
      %s492 = sadd.s32 %s491, 1
      %p495 = scmp.eq.s32.totalorder %s41, 3
      %p496 = scmp.ne.s32.totalorder %s491, %s493
      %p497 = scmp.eq.s32.totalorder %s41, 0
      %p498 = por %p496, %p497
      %p499 = scmp.ne.s32.totalorder %s491, %s493
      %p500 = scmp.eq.s32.totalorder %s46, 3
      %p501 = por %p499, %p500
      %p502 = scmp.ne.s32.totalorder %s493, %s494
      %p503 = scmp.eq.s32.totalorder %s46, 0
      %p504 = por %p502, %p503
      %p505 = scmp.ne.s32.totalorder %s493, %s494
      %p506 = scmp.eq.s32.totalorder %s47, 3
      %p507 = por %p505, %p506
      %p509 = scmp.ne.s32.totalorder %s494, %s508
      %p510 = scmp.eq.s32.totalorder %s47, 0
      %p511 = por %p509, %p510
      %s513 = sadd.s32 %s512, 1
      %p516 = scmp.eq.s32.totalorder %s41, 3
      %p517 = scmp.ne.s32.totalorder %s512, %s514
      %p518 = scmp.eq.s32.totalorder %s41, 0
      %p519 = por %p517, %p518
      %p520 = scmp.ne.s32.totalorder %s512, %s514
      %p521 = scmp.eq.s32.totalorder %s46, 3
      %p522 = por %p520, %p521
      %p523 = scmp.ne.s32.totalorder %s514, %s515
      %p524 = scmp.eq.s32.totalorder %s46, 0
      %p525 = por %p523, %p524
      %p526 = scmp.ne.s32.totalorder %s514, %s515
      %p527 = scmp.eq.s32.totalorder %s47, 3
      %p528 = por %p526, %p527
      %p530 = scmp.ne.s32.totalorder %s515, %s529
      %p531 = scmp.eq.s32.totalorder %s47, 0
      %p532 = por %p530, %p531
      %s534 = sadd.s32 %s533, 1
      %p537 = scmp.eq.s32.totalorder %s41, 3
      %p538 = scmp.ne.s32.totalorder %s533, %s535
      %p539 = scmp.eq.s32.totalorder %s41, 0
      %p540 = por %p538, %p539
      %p541 = scmp.ne.s32.totalorder %s533, %s535
      %p542 = scmp.eq.s32.totalorder %s46, 3
      %p543 = por %p541, %p542
      %p544 = scmp.ne.s32.totalorder %s535, %s536
      %p545 = scmp.eq.s32.totalorder %s46, 0
      %p546 = por %p544, %p545
      %p547 = scmp.ne.s32.totalorder %s535, %s536
      %p548 = scmp.eq.s32.totalorder %s47, 3
      %p549 = por %p547, %p548
      %p551 = scmp.ne.s32.totalorder %s536, %s550
      %p552 = scmp.eq.s32.totalorder %s47, 0
      %p553 = por %p551, %p552
      %s555 = sadd.s32 %s554, 1
      %p558 = scmp.eq.s32.totalorder %s41, 3
      %p559 = scmp.ne.s32.totalorder %s554, %s556
      %p560 = scmp.eq.s32.totalorder %s41, 0
      %p561 = por %p559, %p560
      %p562 = scmp.ne.s32.totalorder %s554, %s556
      %p563 = scmp.eq.s32.totalorder %s46, 3
      %p564 = por %p562, %p563
      %p565 = scmp.ne.s32.totalorder %s556, %s557
      %p566 = scmp.eq.s32.totalorder %s46, 0
      %p567 = por %p565, %p566
      %p568 = scmp.ne.s32.totalorder %s556, %s557
      %p569 = scmp.eq.s32.totalorder %s47, 3
      %p570 = por %p568, %p569
      %p572 = scmp.ne.s32.totalorder %s557, %s571
      %p573 = scmp.eq.s32.totalorder %s47, 0
      %p574 = por %p572, %p573
      %s575 = ssub.s32 %s48, %s60
      %s576 = ssub.s32 %s49, %s56
      %s577 = sor.u32 %s575, %s576
      %p578 = scmp.eq.s32.totalorder %s577, 0
      %s580 = sadd.s32 %s579, 1
      %s581 = scalar_select %p578, %s579, %s580
      %p584 = pneg %p578
      %p585 = scmp.eq.s32.totalorder %s41, 3
      %p586 = por %p584, %p585
      %p587 = scmp.ne.s32.totalorder %s579, %s582
      %p588 = scmp.eq.s32.totalorder %s41, 0
      %p589 = por %p587, %p588
      %p590 = scmp.ne.s32.totalorder %s579, %s582
      %p591 = scmp.eq.s32.totalorder %s46, 3
      %p592 = por %p590, %p591
      %p593 = scmp.ne.s32.totalorder %s582, %s583
      %p594 = scmp.eq.s32.totalorder %s46, 0
      %p595 = por %p593, %p594
      %p596 = scmp.ne.s32.totalorder %s582, %s583
      %p597 = scmp.eq.s32.totalorder %s47, 3
      %p598 = por %p596, %p597
      %p600 = scmp.ne.s32.totalorder %s583, %s599
      %p601 = scmp.eq.s32.totalorder %s47, 0
      %p602 = por %p600, %p601
      %p603 = scmp.le.s32.totalorder 1, %s41
      %p604 = scmp.lt.s32.totalorder %s41, 5
      %p605 = pnand %p603, %p604
      %p606 = pneg %p605
      // Predicated region
      $region9: #{tpu_custom_call.1} parent=5 // pred_check
        _
      $region10: #{tpu_custom_call.1} parent=5 // pred_check_branch
        %608 = sbr.rel (%p605) target = $region12
      $region11: #{tpu_custom_call.1} parent=5 // pred_region
        %s609 = ssub.s32 %s41, 1
        // Predicated region
        $region13: #{tpu_custom_call.1} parent=11 // pred_check
          %p610 = pneg %p210
        $region14: #{tpu_custom_call.1} parent=11 // pred_check_branch
          %612 = sbr.rel (%p610) target = $region16
        $region15: #{tpu_custom_call.1} parent=11 // pred_region
          %614 = vsyncadd [#allocation12], 0
          %s615 = sshll.u32 %s5, 4
          %s616 = int_to_ptr.hbm [resolvable:$true] %s615
          %s617 = sshll.u32 [#allocation11], 4
          %s618 = int_to_ptr.vmem [resolvable:$true] %s617
          %623 = dma.hbm_to_vmem [thread:$0]  %s616, 256, %s618, [#allocation12], 64, 64, 4
        $region16: #{tpu_custom_call.1} parent=11 // pred_fallthru
          _
        // Predicated region
        $region17: #{tpu_custom_call.1} parent=11 // pred_check
          %p624 = pneg %p231
        $region18: #{tpu_custom_call.1} parent=11 // pred_check_branch
          %626 = sbr.rel (%p624) target = $region20
        $region19: #{tpu_custom_call.1} parent=11 // pred_region
          _
        $region20: #{tpu_custom_call.1} parent=11 // pred_fallthru
          _
        // Predicated region
        $region21: #{tpu_custom_call.1} parent=11 // pred_check
          %p627 = pneg %p252
        $region22: #{tpu_custom_call.1} parent=11 // pred_check_branch
          %629 = sbr.rel (%p627) target = $region24
        $region23: #{tpu_custom_call.1} parent=11 // pred_region
          %631 = vsyncadd [#allocation12], 0
          %s632 = sshll.u32 %s7, 4
          %s633 = int_to_ptr.hbm [resolvable:$true] %s632
          %s634 = sshll.u32 [#allocation13], 4
          %s635 = int_to_ptr.vmem [resolvable:$true] %s634
          %640 = dma.hbm_to_vmem [thread:$0]  %s633, 256, %s635, [#allocation12], 64, 64, 4
        $region24: #{tpu_custom_call.1} parent=11 // pred_fallthru
          _
        // Predicated region
        $region25: #{tpu_custom_call.1} parent=11 // pred_check
          %p641 = pneg %p273
        $region26: #{tpu_custom_call.1} parent=11 // pred_check_branch
          %643 = sbr.rel (%p641) target = $region28
        $region27: #{tpu_custom_call.1} parent=11 // pred_region
          _
        $region28: #{tpu_custom_call.1} parent=11 // pred_fallthru
          _
        // Predicated region
        $region29: #{tpu_custom_call.1} parent=11 // pred_check
          %p644 = pneg %p294
        $region30: #{tpu_custom_call.1} parent=11 // pred_check_branch
          %646 = sbr.rel (%p644) target = $region32
        $region31: #{tpu_custom_call.1} parent=11 // pred_region
          %648 = vsyncadd [#allocation15], 0
          %s649 = sshll.u32 %s9, 4
          %s650 = int_to_ptr.hbm [resolvable:$true] %s649
          %s651 = sshll.u32 [#allocation14], 4
          %s652 = int_to_ptr.vmem [resolvable:$true] %s651
          %657 = dma.hbm_to_vmem [thread:$0]  %s650, 256, %s652, [#allocation15], 64, 64, 4
        $region32: #{tpu_custom_call.1} parent=11 // pred_fallthru
          _
        // Predicated region
        $region33: #{tpu_custom_call.1} parent=11 // pred_check
          %p658 = pneg %p315
        $region34: #{tpu_custom_call.1} parent=11 // pred_check_branch
          %660 = sbr.rel (%p658) target = $region36
        $region35: #{tpu_custom_call.1} parent=11 // pred_region
          _
        $region36: #{tpu_custom_call.1} parent=11 // pred_fallthru
          _
        // Predicated region
        $region37: #{tpu_custom_call.1} parent=11 // pred_check
          %p661 = pneg %p336
        $region38: #{tpu_custom_call.1} parent=11 // pred_check_branch
          %663 = sbr.rel (%p661) target = $region40
        $region39: #{tpu_custom_call.1} parent=11 // pred_region
          %665 = vsyncadd [#allocation15], 0
          %s666 = sshll.u32 %s11, 4
          %s667 = int_to_ptr.hbm [resolvable:$true] %s666
          %s668 = sshll.u32 [#allocation16], 4
          %s669 = int_to_ptr.vmem [resolvable:$true] %s668
          %674 = dma.hbm_to_vmem [thread:$0]  %s667, 256, %s669, [#allocation15], 64, 64, 4
        $region40: #{tpu_custom_call.1} parent=11 // pred_fallthru
          _
        // Predicated region
        $region41: #{tpu_custom_call.1} parent=11 // pred_check
          %p675 = pneg %p357
        $region42: #{tpu_custom_call.1} parent=11 // pred_check_branch
          %677 = sbr.rel (%p675) target = $region44
        $region43: #{tpu_custom_call.1} parent=11 // pred_region
          _
        $region44: #{tpu_custom_call.1} parent=11 // pred_fallthru
          _
        // Predicated region
        $region45: #{tpu_custom_call.1} parent=11 // pred_check
          %p678 = pneg %p378
        $region46: #{tpu_custom_call.1} parent=11 // pred_check_branch
          %680 = sbr.rel (%p678) target = $region48
        $region47: #{tpu_custom_call.1} parent=11 // pred_region
          _
        $region48: #{tpu_custom_call.1} parent=11 // pred_fallthru
          _
        // Predicated region
        $region49: #{tpu_custom_call.1} parent=11 // pred_check
          %p681 = pneg %p399
        $region50: #{tpu_custom_call.1} parent=11 // pred_check_branch
          %683 = sbr.rel (%p681) target = $region52
        $region51: #{tpu_custom_call.1} parent=11 // pred_region
          _
        $region52: #{tpu_custom_call.1} parent=11 // pred_fallthru
          _
        // Predicated region
        $region53: #{tpu_custom_call.1} parent=11 // pred_check
          %p684 = pneg %p420
        $region54: #{tpu_custom_call.1} parent=11 // pred_check_branch
          %686 = sbr.rel (%p684) target = $region56
        $region55: #{tpu_custom_call.1} parent=11 // pred_region
          _
        $region56: #{tpu_custom_call.1} parent=11 // pred_fallthru
          _
        // Predicated region
        $region57: #{tpu_custom_call.1} parent=11 // pred_check
          %p687 = pneg %p441
        $region58: #{tpu_custom_call.1} parent=11 // pred_check_branch
          %689 = sbr.rel (%p687) target = $region60
        $region59: #{tpu_custom_call.1} parent=11 // pred_region
          _
        $region60: #{tpu_custom_call.1} parent=11 // pred_fallthru
          _
        // Predicated region
        $region61: #{tpu_custom_call.1} parent=11 // pred_check
          %p690 = pneg %p462
        $region62: #{tpu_custom_call.1} parent=11 // pred_check_branch
          %692 = sbr.rel (%p690) target = $region64
        $region63: #{tpu_custom_call.1} parent=11 // pred_region
          %694 = vsyncadd [#allocation18], 0
          %s695 = sshll.u32 %s17, 4
          %s696 = int_to_ptr.hbm [resolvable:$true] %s695
          %s697 = sshll.u32 [#allocation17], 4
          %s698 = int_to_ptr.vmem [resolvable:$true] %s697
          %703 = dma.hbm_to_vmem [thread:$0]  %s696, 256, %s698, [#allocation18], 64, 64, 4
        $region64: #{tpu_custom_call.1} parent=11 // pred_fallthru
          _
        // Predicated region
        $region65: #{tpu_custom_call.1} parent=11 // pred_check
          %p704 = pneg %p483
        $region66: #{tpu_custom_call.1} parent=11 // pred_check_branch
          %706 = sbr.rel (%p704) target = $region68
        $region67: #{tpu_custom_call.1} parent=11 // pred_region
          _
        $region68: #{tpu_custom_call.1} parent=11 // pred_fallthru
          _
        // Predicated region
        $region69: #{tpu_custom_call.1} parent=11 // pred_check
          %p707 = pneg %p504
        $region70: #{tpu_custom_call.1} parent=11 // pred_check_branch
          %709 = sbr.rel (%p707) target = $region72
        $region71: #{tpu_custom_call.1} parent=11 // pred_region
          _
        $region72: #{tpu_custom_call.1} parent=11 // pred_fallthru
          _
        // Predicated region
        $region73: #{tpu_custom_call.1} parent=11 // pred_check
          %p710 = pneg %p525
        $region74: #{tpu_custom_call.1} parent=11 // pred_check_branch
          %712 = sbr.rel (%p710) target = $region76
        $region75: #{tpu_custom_call.1} parent=11 // pred_region
          _
        $region76: #{tpu_custom_call.1} parent=11 // pred_fallthru
          _
        // Predicated region
        $region77: #{tpu_custom_call.1} parent=11 // pred_check
          %p713 = pneg %p546
        $region78: #{tpu_custom_call.1} parent=11 // pred_check_branch
          %715 = sbr.rel (%p713) target = $region80
        $region79: #{tpu_custom_call.1} parent=11 // pred_region
          _
        $region80: #{tpu_custom_call.1} parent=11 // pred_fallthru
          _
        // Predicated region
        $region81: #{tpu_custom_call.1} parent=11 // pred_check
          %p716 = pneg %p567
        $region82: #{tpu_custom_call.1} parent=11 // pred_check_branch
          %718 = sbr.rel (%p716) target = $region84
        $region83: #{tpu_custom_call.1} parent=11 // pred_region
          _
        $region84: #{tpu_custom_call.1} parent=11 // pred_fallthru
          _
      $region12: #{tpu_custom_call.1} parent=5 // pred_fallthru
        _
      %p719 = scmp.lt.s32.totalorder %s41, 4
      // Predicated region
      $region85: #{tpu_custom_call.1} parent=5 // pred_check
        %p720 = pneg %p719
      $region86: #{tpu_custom_call.1} parent=5 // pred_check_branch
        %722 = sbr.rel (%p720) target = $region88
      $region87: #{tpu_custom_call.1} parent=5 // pred_region
        // Predicated region
        $region89: #{tpu_custom_call.1} parent=87 // pred_check
          %p723 = pneg %p75
        $region90: #{tpu_custom_call.1} parent=87 // pred_check_branch
          %725 = sbr.rel (%p723) target = $region92
        $region91: #{tpu_custom_call.1} parent=87 // pred_region
          %p726 = scmp.lt.s32.totalorder %s48, 1
          %s727 = scalar_select %p726, %s48, 1
          %p728 = scmp.lt.s32.totalorder %s49, 1
          %s729 = scalar_select %p728, %s49, 1
          %s730 = smul.addr %s727, 2
          %s731 = sadd.s32 %s729, %s730
          %s732 = smul.addr %s731, 8
          %s733 = scalar_lea.vmem %s0, %s732
        $region92: #{tpu_custom_call.1} parent=87 // pred_fallthru
          _
        // Predicated region
        $region93: #{tpu_custom_call.1} parent=87 // pred_check
          %p734 = pneg %p101
        $region94: #{tpu_custom_call.1} parent=87 // pred_check_branch
          %736 = sbr.rel (%p734) target = $region96
        $region95: #{tpu_custom_call.1} parent=87 // pred_region
          %p737 = scmp.lt.s32.totalorder %s48, 1
          %s738 = scalar_select %p737, %s48, 1
          %s739 = smul.addr %s738, 2
          %s740 = smul.addr %s739, 8
          %s741 = scalar_lea.vmem %s1, %s740
        $region96: #{tpu_custom_call.1} parent=87 // pred_fallthru
          _
        // Predicated region
        $region97: #{tpu_custom_call.1} parent=87 // pred_check
          %p742 = pneg %p129
        $region98: #{tpu_custom_call.1} parent=87 // pred_check_branch
          %744 = sbr.rel (%p742) target = $region100
        $region99: #{tpu_custom_call.1} parent=87 // pred_region
          %s745 = sand.u32 %s119, 1
          %s746 = scalar_lea.sflag [#allocation6], %s745
          %s747 = sand.u32 %s119, 1
          %s748 = smul.addr %s747, 8
          %s749 = scalar_lea.vmem [#allocation5], %s748
          %751 = vsyncadd %s746, 0
          %s752 = smul.addr %s48, 2
          %s753 = sadd.s32 %s49, %s752
          %s754 = smul.addr %s753, 8
          %s755 = scalar_lea.hbm %s2, %s754
          %s757 = sshll.u32 %s755, 4
          %s758 = int_to_ptr.hbm [resolvable:$true] %s757
          %s759 = sshll.u32 %s749, 4
          %s760 = int_to_ptr.vmem [resolvable:$true] %s759
          %762 = dma.hbm_to_vmem [thread:$0]  %s758, 128, %s760, %s746
        $region100: #{tpu_custom_call.1} parent=87 // pred_fallthru
          _
        // Predicated region
        $region101: #{tpu_custom_call.1} parent=87 // pred_check
          %p763 = pneg %p155
        $region102: #{tpu_custom_call.1} parent=87 // pred_check_branch
          %765 = sbr.rel (%p763) target = $region104
        $region103: #{tpu_custom_call.1} parent=87 // pred_region
          %s766 = sand.u32 %s41, 1
          %s767 = scalar_lea.sflag [#allocation9], %s766
          %s768 = sand.u32 %s145, 1
          %s769 = smul.addr %s768, 16
          %s770 = scalar_lea.vmem [#allocation8], %s769
          %772 = vsyncadd %s767, 0
          %s773 = smul.addr %s48, 2
          %s774 = smul.addr %s773, 8
          %s775 = scalar_lea.hbm %s3, %s774
          %s776 = sshll.u32 %s775, 4
          %s777 = int_to_ptr.hbm [resolvable:$true] %s776
          %s778 = sshll.u32 %s770, 4
          %s779 = int_to_ptr.vmem [resolvable:$true] %s778
          %784 = dma.hbm_to_vmem [thread:$0]  %s777, 256, %s779, %s767, 128, 128, 8
        $region104: #{tpu_custom_call.1} parent=87 // pred_fallthru
          _
        // Predicated region
        $region105: #{tpu_custom_call.1} parent=87 // pred_check
          %p785 = pneg %p183
        $region106: #{tpu_custom_call.1} parent=87 // pred_check_branch
          %787 = sbr.rel (%p785) target = $region108
        $region107: #{tpu_custom_call.1} parent=87 // pred_region
          %s788 = sand.u32 %s41, 1
          %s789 = scalar_lea.sflag [#allocation9], %s788
          %s790 = sand.u32 %s173, 1
          %s791 = smul.addr %s790, 8
          %s792 = scalar_lea.vmem [#allocation10], %s791
          %794 = vsyncadd %s789, 0
          %s795 = smul.addr %s48, 2
          %s796 = sadd.s32 %s49, %s795
          %s797 = smul.addr %s796, 8
          %s798 = scalar_lea.hbm %s4, %s797
          %s800 = sshll.u32 %s798, 4
          %s801 = int_to_ptr.hbm [resolvable:$true] %s800
          %s802 = sshll.u32 %s792, 4
          %s803 = int_to_ptr.vmem [resolvable:$true] %s802
          %805 = dma.hbm_to_vmem [thread:$0]  %s801, 128, %s803, %s789
        $region108: #{tpu_custom_call.1} parent=87 // pred_fallthru
          _
      $region88: #{tpu_custom_call.1} parent=5 // pred_fallthru
        _
      %p806 = scmp.le.s32.totalorder 1, %s41
      %p807 = scmp.lt.s32.totalorder %s41, 5
      %p808 = pnand %p806, %p807
      %p809 = pneg %p808
      // Predicated region
      $region109: #{tpu_custom_call.1} parent=5 // pred_check
        _
      $region110: #{tpu_custom_call.1} parent=5 // pred_check_branch
        %811 = sbr.rel (%p808) target = $region112
      $region111: #{tpu_custom_call.1} parent=5 // pred_region
        %s812 = ssub.s32 %s41, 1
        %s813 = sand.u32 %s122, 1
        %s814 = scalar_lea.sflag [#allocation6], %s813
        %s815 = sand.u32 %s122, 1
        %s816 = smul.addr %s815, 8
        %s817 = scalar_lea.vmem [#allocation5], %s816
        // Predicated region
        $region113: #{tpu_custom_call.1} parent=111 // pred_check
          %p818 = pneg %p135
        $region114: #{tpu_custom_call.1} parent=111 // pred_check_branch
          %820 = sbr.rel (%p818) target = $region116
        $region115: #{tpu_custom_call.1} parent=111 // pred_region
          %822 = dma.done %s814, 128
        $region116: #{tpu_custom_call.1} parent=111 // pred_fallthru
          _
        %s823 = sand.u32 %s46, 1
        %s824 = scalar_lea.sflag [#allocation9], %s823
        %s825 = sand.u32 %s148, 1
        %s826 = smul.addr %s825, 16
        %s827 = scalar_lea.vmem [#allocation8], %s826
        // Predicated region
        $region117: #{tpu_custom_call.1} parent=111 // pred_check
          %p828 = pneg %p161
        $region118: #{tpu_custom_call.1} parent=111 // pred_check_branch
          %830 = sbr.rel (%p828) target = $region120
        $region119: #{tpu_custom_call.1} parent=111 // pred_region
          %832 = dma.done %s824, 256
        $region120: #{tpu_custom_call.1} parent=111 // pred_fallthru
          _
        %s833 = sand.u32 %s46, 1
        %s834 = scalar_lea.sflag [#allocation9], %s833
        %s835 = sand.u32 %s176, 1
        %s836 = smul.addr %s835, 8
        %s837 = scalar_lea.vmem [#allocation10], %s836
        // Predicated region
        $region121: #{tpu_custom_call.1} parent=111 // pred_check
          %p838 = pneg %p189
        $region122: #{tpu_custom_call.1} parent=111 // pred_check_branch
          %840 = sbr.rel (%p838) target = $region124
        $region123: #{tpu_custom_call.1} parent=111 // pred_region
          %842 = dma.done %s834, 128
        $region124: #{tpu_custom_call.1} parent=111 // pred_fallthru
          _
        // Predicated region
        $region125: #{tpu_custom_call.1} parent=111 // pred_check
          %p843 = pneg %p210
        $region126: #{tpu_custom_call.1} parent=111 // pred_check_branch
          %845 = sbr.rel (%p843) target = $region128
        $region127: #{tpu_custom_call.1} parent=111 // pred_region
          %847 = dma.done [#allocation12], 256
        $region128: #{tpu_custom_call.1} parent=111 // pred_fallthru
          _
        // Predicated region
        $region129: #{tpu_custom_call.1} parent=111 // pred_check
          %p848 = pneg %p252
        $region130: #{tpu_custom_call.1} parent=111 // pred_check_branch
          %850 = sbr.rel (%p848) target = $region132
        $region131: #{tpu_custom_call.1} parent=111 // pred_region
          %852 = dma.done [#allocation12], 256
        $region132: #{tpu_custom_call.1} parent=111 // pred_fallthru
          _
        // Predicated region
        $region133: #{tpu_custom_call.1} parent=111 // pred_check
          %p853 = pneg %p294
        $region134: #{tpu_custom_call.1} parent=111 // pred_check_branch
          %855 = sbr.rel (%p853) target = $region136
        $region135: #{tpu_custom_call.1} parent=111 // pred_region
          %857 = dma.done [#allocation15], 256
        $region136: #{tpu_custom_call.1} parent=111 // pred_fallthru
          _
        // Predicated region
        $region137: #{tpu_custom_call.1} parent=111 // pred_check
          %p858 = pneg %p336
        $region138: #{tpu_custom_call.1} parent=111 // pred_check_branch
          %860 = sbr.rel (%p858) target = $region140
        $region139: #{tpu_custom_call.1} parent=111 // pred_region
          %862 = dma.done [#allocation15], 256
        $region140: #{tpu_custom_call.1} parent=111 // pred_fallthru
          _
        // Predicated region
        $region141: #{tpu_custom_call.1} parent=111 // pred_check
          %p863 = pneg %p462
        $region142: #{tpu_custom_call.1} parent=111 // pred_check_branch
          %865 = sbr.rel (%p863) target = $region144
        $region143: #{tpu_custom_call.1} parent=111 // pred_region
          %867 = dma.done [#allocation18], 256
        $region144: #{tpu_custom_call.1} parent=111 // pred_fallthru
          _
        %p868 = scmp.lt.s32.totalorder %s50, 1
        %s869 = scalar_select %p868, %s50, 1
        %p870 = scmp.lt.s32.totalorder %s51, 1
        %s871 = scalar_select %p870, %s51, 1
        %s872 = smul.addr %s869, 2
        %s873 = sadd.s32 %s871, %s872
        %s874 = smul.addr %s873, 8
        %s875 = scalar_lea.vmem %s0, %s874
        %p876 = pneg %p81
        %p877 = pneg %p78
        %p878 = scmp.lt.s32.totalorder %s50, 1
        %s879 = scalar_select %p878, %s50, 1
        %s880 = smul.addr %s879, 2
        %s881 = smul.addr %s880, 8
        %s882 = scalar_lea.vmem %s1, %s881
        %p883 = pneg %p107
        %p884 = pneg %p104
        %s885 = sand.u32 %s122, 1
        %s886 = scalar_lea.sflag [#allocation6], %s885
        %s887 = sand.u32 %s122, 1
        %s888 = smul.addr %s887, 8
        %s889 = scalar_lea.vmem [#allocation5], %s888
        %p890 = pneg %p135
        %p891 = pneg %p132
        %s892 = sand.u32 %s46, 1
        %s893 = scalar_lea.sflag [#allocation9], %s892
        %s894 = sand.u32 %s148, 1
        %s895 = smul.addr %s894, 16
        %s896 = scalar_lea.vmem [#allocation8], %s895
        %p897 = pneg %p161
        %p898 = pneg %p158
        %s899 = sand.u32 %s46, 1
        %s900 = scalar_lea.sflag [#allocation9], %s899
        %s901 = sand.u32 %s176, 1
        %s902 = smul.addr %s901, 8
        %s903 = scalar_lea.vmem [#allocation10], %s902
        %p904 = pneg %p189
        %p905 = pneg %p186
        %p906 = pneg %p210
        %p907 = pneg %p207
        %p908 = pneg %p231
        %p909 = pneg %p228
        %p910 = pneg %p252
        %p911 = pneg %p249
        %p912 = pneg %p273
        %p913 = pneg %p270
        %p914 = pneg %p294
        %p915 = pneg %p291
        %p916 = pneg %p315
        %p917 = pneg %p312
        %p918 = pneg %p336
        %p919 = pneg %p333
        %p920 = pneg %p357
        %p921 = pneg %p354
        %p922 = pneg %p378
        %p923 = pneg %p375
        %p924 = pneg %p399
        %p925 = pneg %p396
        %p926 = pneg %p420
        %p927 = pneg %p417
        %p928 = pneg %p441
        %p929 = pneg %p438
        %p930 = pneg %p462
        %p931 = pneg %p459
        %p932 = pneg %p483
        %p933 = pneg %p480
        %p934 = pneg %p504
        %p935 = pneg %p501
        %p936 = pneg %p525
        %p937 = pneg %p522
        %p938 = pneg %p546
        %p939 = pneg %p543
        %p940 = pneg %p567
        %p941 = pneg %p564
        %p942 = pneg %p595
        %p943 = pneg %p592
        %s944 = sand.u32 %s582, 1
        %s945 = scalar_lea.sflag [#allocation7], %s944
        %s946 = sand.u32 %s582, 1
        %s947 = smul.addr %s946, 8
        %s948 = scalar_lea.vmem [#allocation19], %s947
        %p949 = scmp.lt.s32.totalorder %s50, 1
        %s950 = scalar_select %p949, %s50, 1
        %p951 = scmp.lt.s32.totalorder %s51, 1
        %s952 = scalar_select %p951, %s51, 1
        %s953 = smul.addr %s950, 2
        %s954 = sadd.s32 %s952, %s953
        %s955 = smul.addr %s954, 8
        %s956 = scalar_lea.vmem %s0, %s955
        %p957 = scmp.lt.s32.totalorder %s50, 1
        %s958 = scalar_select %p957, %s50, 1
        %s959 = smul.addr %s958, 2
        %s960 = smul.addr %s959, 8
        %s961 = scalar_lea.vmem %s1, %s960
        %p963 = scmp.eq.s32.totalorder %s51, 0
        // Predicated region
        $region145: #{tpu_custom_call.1} parent=111 // pred_check
          %p964 = pneg %p963
        $region146: #{tpu_custom_call.1} parent=111 // pred_check_branch
          %966 = sbr.rel (%p964) target = $region148
        $region147: #{tpu_custom_call.1} parent=111 // pred_region
          %v967 = vld [vmem:[%s961] sm:$0xff]
          %v968 = vld [vmem:[%s961 + $0x8] sm:$0xff]
          %v969 = vld [vmem:[%s827] sm:$0xff]
          %v970 = vld [vmem:[%s827 + $0x8] sm:$0xff]
          %v971 = vadd.f32 %v967, %v969
          %v972 = vadd.f32 %v968, %v970
          %v973 = vpack.c.bf16 %v972, %v971
          %v974 = vpack.c.bf16 %v968, %v967
          %v975 = vld [vmem:[#allocation13] sm:$0xf]
          %v976 = vld [vmem:[#allocation13 + $0x4] sm:$0xf]
          %v977 = vld [vmem:[#allocation13 + $0x8] sm:$0xf]
          %v978 = vld [vmem:[#allocation13 + $0xc] sm:$0xf]
          %v979 = vld [vmem:[%s8] sm:$0x1]
          %v981 = vperm.slane %v979, 0
          %v987 = vunpack.c.l.b16 %v975
          %v988 = vunpack.c.l.b16 %v976
          %v989 = vunpack.c.l.b16 %v977
          %v990 = vunpack.c.l.b16 %v978
          %v991 = vpack.c.b16 %v988, %v987
          %v992 = vpack.c.b16 %v990, %v989
          %vm995 = vcmask 261120
          %v997 = vsel %vm995, %v973, 0
          %999 = vmatpush.bf16.msra.mxu0 0
          %1000 = vmatpush.bf16.msra.mxu0 0
          %1001 = vmatpush.bf16.msra.mxu0 0
          %1002 = vmatpush.bf16.msra.mxu0 0
          %1003 = vmatpush.bf16.msra.mxu0 0
          %1004 = vmatpush.bf16.msra.mxu0 0
          %1005 = vmatpush.bf16.msra.mxu0 %v992
          %1006 = vmatpush.bf16.msra.mxu0 %v991
          %1007 = vmatmul.bf16.gmra.mxu0 %v997
          %v1008 = vpop.f32.mrf.mxu0
          %v1009 = vadd.f32 %v981, %v1008
          %v1010 = vpop.f32.mrf.mxu0
          %v1011 = vadd.f32 %v981, %v1010
          %1012 = vdwg.mxu0
          %v1013 = vld [vmem:[#allocation14] sm:$0xf]
          %v1014 = vld [vmem:[#allocation14 + $0x4] sm:$0xf]
          %v1015 = vld [vmem:[#allocation14 + $0x8] sm:$0xf]
          %v1016 = vld [vmem:[#allocation14 + $0xc] sm:$0xf]
          %v1017 = vld [vmem:[%s10] sm:$0x1]
          %v1019 = vperm.slane %v1017, 0
          %v1025 = vunpack.c.l.b16 %v1013
          %v1026 = vunpack.c.l.b16 %v1014
          %v1027 = vunpack.c.l.b16 %v1015
          %v1028 = vunpack.c.l.b16 %v1016
          %v1029 = vpack.c.b16 %v1026, %v1025
          %v1030 = vpack.c.b16 %v1028, %v1027
          %v1034 = vsel %vm995, %v974, 0
          %1036 = vmatpush.bf16.msra.mxu0 0
          %1037 = vmatpush.bf16.msra.mxu0 0
          %1038 = vmatpush.bf16.msra.mxu0 0
          %1039 = vmatpush.bf16.msra.mxu0 0
          %1040 = vmatpush.bf16.msra.mxu0 0
          %1041 = vmatpush.bf16.msra.mxu0 0
          %1042 = vmatpush.bf16.msra.mxu0 %v1030
          %1043 = vmatpush.bf16.msra.mxu0 %v1029
          %1044 = vmatmul.bf16.gmra.mxu0 %v1034
          %v1045 = vpop.f32.mrf.mxu0
          %v1046 = vadd.f32 %v1019, %v1045
          %v1047 = vpop.f32.mrf.mxu0
          %v1048 = vadd.f32 %v1019, %v1047
          %1049 = vdwg.mxu0
          %v1050 = vpack.c.bf16 %v1009, %v1009
          %v1051 = vpack.c.bf16 %v1011, %v1011
          %vm1052 = vcmask 257024
          %1053 = vst.msk [vmem:[#allocation3] sm:$0xf] %vm1052, %v1050
          %1054 = vst.msk [vmem:[#allocation3 + $0x4] sm:$0xf] %vm1052, %v1051
          %v1055 = vpack.c.bf16 %v1046, %v1046
          %v1056 = vpack.c.bf16 %v1048, %v1048
          %1057 = vst.msk [vmem:[#allocation4] sm:$0xf] %vm1052, %v1055
          %1058 = vst.msk [vmem:[#allocation4 + $0x4] sm:$0xf] %vm1052, %v1056
        $region148: #{tpu_custom_call.1} parent=111 // pred_fallthru
          _
        %v1059 = vld [vmem:[%s956] sm:$0xff]
        %v1060 = vld [vmem:[%s817] sm:$0xff]
        %v1061 = vadd.f32 %v1059, %v1060
        %v1062 = vpack.c.bf16 %v1061, %v1061
        %v1063 = vld [vmem:[%s837] sm:$0xff]
        %v1064 = vld [vmem:[%s13] sm:$0xff]
        %v1065 = vld [vmem:[%s13 + $0x8] sm:$0xff]
        %v1066 = vld [vmem:[%s13 + $0x10] sm:$0xff]
        %v1067 = vld [vmem:[%s13 + $0x18] sm:$0xff]
        %v1068 = vld [vmem:[%s14] sm:$0x1]
        %v1070 = vperm.slane %v1068, 0
        %vm1072 = vcmask 261120
        %v1074 = vsel %vm1072, %v1059, 0
        %1076 = vmatpush.msra.mxu0 0.0
        %1077 = vmatpush.msra.mxu0 0.0
        %1078 = vmatpush.msra.mxu0 0.0
        %1079 = vmatpush.msra.mxu0 0.0
        %1080 = vmatpush.msra.mxu0 0.0
        %1081 = vmatpush.msra.mxu0 0.0
        %1082 = vmatpush.msra.mxu0 0.0
        %1083 = vmatpush.msra.mxu0 0.0
        %1084 = vmatpush.msra.mxu0 0.0
        %1085 = vmatpush.msra.mxu0 0.0
        %1086 = vmatpush.msra.mxu0 0.0
        %1087 = vmatpush.msra.mxu0 0.0
        %1088 = vmatpush.msra.mxu0 %v1067
        %1089 = vmatpush.msra.mxu0 %v1066
        %1090 = vmatpush.msra.mxu0 %v1065
        %1091 = vmatpush.msra.mxu0 %v1064
        %1092 = vmatmul.f32.gmra.mxu0 %v1074
        %v1093 = vpop.f32.mrf.mxu0
        %v1094 = vadd.f32 %v1070, %v1093
        %1095 = vdwg.mxu0
        %v1096 = vld [vmem:[#allocation11] sm:$0xf]
        %v1097 = vld [vmem:[#allocation11 + $0x4] sm:$0xf]
        %v1098 = vld [vmem:[#allocation11 + $0x8] sm:$0xf]
        %v1099 = vld [vmem:[#allocation11 + $0xc] sm:$0xf]
        %v1100 = vld [vmem:[%s6] sm:$0x1]
        %v1102 = vperm.slane %v1100, 0
        %v1108 = vunpack.c.l.b16 %v1096
        %v1109 = vunpack.c.l.b16 %v1097
        %v1110 = vunpack.c.l.b16 %v1098
        %v1111 = vunpack.c.l.b16 %v1099
        %v1112 = vpack.c.b16 %v1109, %v1108
        %v1113 = vpack.c.b16 %v1111, %v1110
        %v1117 = vsel %vm1072, %v1062, 0
        %1119 = vmatpush.bf16.msra.mxu0 0
        %1120 = vmatpush.bf16.msra.mxu0 0
        %1121 = vmatpush.bf16.msra.mxu0 0
        %1122 = vmatpush.bf16.msra.mxu0 0
        %1123 = vmatpush.bf16.msra.mxu0 0
        %1124 = vmatpush.bf16.msra.mxu0 0
        %1125 = vmatpush.bf16.msra.mxu0 %v1113
        %1126 = vmatpush.bf16.msra.mxu0 %v1112
        %1127 = vmatmul.bf16.gmra.mxu0 %v1117
        %v1128 = vpop.f32.mrf.mxu0
        %v1129 = vadd.f32 %v1102, %v1128
        %v1130 = vpop.f32.mrf.mxu0
        %1131 = vdwg.mxu0
        %v1132 = vpack.c.bf16 %v1129, %v1129
        %v1133 = vld [vmem:[#allocation3] sm:$0xf]
        %v1134 = vld [vmem:[#allocation3 + $0x4] sm:$0xf]
        %v1135 = vld [vmem:[#allocation4] sm:$0xf]
        %v1136 = vld [vmem:[#allocation4 + $0x4] sm:$0xf]
        %v1139 = vunpack.c.l.b16 %v1133
        %v1140 = vunpack.c.l.b16 %v1134
        %v1141 = vpack.c.b16 %v1140, %v1139
        %vm1142 = vcmask 31744
        %v1144 = vsel %vm1142, %v1132, 0
        %v1147 = vsel %vm1142, %v1141, 0
        %1149 = vmatpush.bf16.xpose.msra.mxu0 0
        %1150 = vmatpush.bf16.xpose.msra.mxu0 0
        %1151 = vmatpush.bf16.xpose.msra.mxu0 0
        %1152 = vmatpush.bf16.xpose.msra.mxu0 0
        %1153 = vmatpush.bf16.xpose.msra.mxu0 0
        %1154 = vmatpush.bf16.xpose.msra.mxu0 0
        %1155 = vmatpush.bf16.xpose.msra.mxu0 0
        %1156 = vmatpush.bf16.xpose.msra.mxu0 %v1147
        %1157 = vmatmul.bf16.gmra.mxu0 %v1144
        %v1158 = vpop.f32.mrf.mxu0
        %v1159 = vadd.f32 0.0, %v1158
        %v1160 = vpop.f32.mrf.mxu0
        %1161 = vdwg.mxu0
        %v1162 = vmul.f32 %v1159, 0.5
        %1164 = vset.pattern.permute.xlu0 0
        %1165 = vperm.xlu0 %1164, %v1094
        %v1166 = vpop.permute.xlu0 %1165
        %v1168 = vmul.f32 %v1063, %v1166
        %v1169 = vadd.f32 %v1162, %v1168
        %vm1170 = vcmask 130048
        %v1171 = vsel %vm1170, %v1169, -inf
        %1172 = vmax.xlane.f32.xlu0 %v1171
        %v1173 = vpop.xlane.xlu0 %1172
        %v1174 = vsub.f32 %v1169, %v1173
        %v1175 = vmul.f32 %v1174, 1.442695
        %v1176 = vpow.pop %v1175
        %v1177 = vsel %vm1170, %v1176, 0.0
        %1178 = vadd.xlane.f32.xlu0 %v1177
        %v1179 = vpop.xlane.xlu0 %1178
        %v1180 = vrcp.pop %v1179
        %v1181 = vmul.f32 %v1176, %v1180
        %v1182 = vpack.c.bf16 %v1181, %v1181
        %v1185 = vunpack.c.l.b16 %v1135
        %v1186 = vunpack.c.l.b16 %v1136
        %v1187 = vpack.c.b16 %v1186, %v1185
        %v1190 = vsel %vm1170, %v1182, 0
        %1192 = vmatpush.bf16.msra.mxu0 0
        %1193 = vmatpush.bf16.msra.mxu0 0
        %1194 = vmatpush.bf16.msra.mxu0 0
        %1195 = vmatpush.bf16.msra.mxu0 0
        %1196 = vmatpush.bf16.msra.mxu0 0
        %1197 = vmatpush.bf16.msra.mxu0 0
        %1198 = vmatpush.bf16.msra.mxu0 0
        %1199 = vmatpush.bf16.msra.mxu0 %v1187
        %1200 = vmatmul.bf16.gmra.mxu0 %v1190
        %v1201 = vpop.f32.mrf.mxu0
        %v1202 = vadd.f32 0.0, %v1201
        %v1203 = vpop.f32.mrf.mxu0
        %1204 = vdwg.mxu0
        %1205 = vst.msk [vmem:[#allocation2] sm:$0xff] %vm1142, %v1202
        %v1207 = vunpack.c.l.b16 %v1132
        %v1208 = vpack.c.b16 %v1207, %v1207
        %1209 = vrot.lane.b32.xlu0 %v1208, 124
        %v1210 = vpop.permute.xlu0 %1209
        %1211 = vrot.lane.b32.xlu0 %v1141, 124
        %v1212 = vpop.permute.xlu0 %1211
        %v1214 = vsel %vm1142, %v1210, 0
        %v1217 = vsel %vm1142, %v1212, 0
        %1219 = vmatpush.bf16.xpose.msra.mxu0 0
        %1220 = vmatpush.bf16.xpose.msra.mxu0 0
        %1221 = vmatpush.bf16.xpose.msra.mxu0 0
        %1222 = vmatpush.bf16.xpose.msra.mxu0 0
        %1223 = vmatpush.bf16.xpose.msra.mxu0 0
        %1224 = vmatpush.bf16.xpose.msra.mxu0 0
        %1225 = vmatpush.bf16.xpose.msra.mxu0 0
        %1226 = vmatpush.bf16.xpose.msra.mxu0 %v1217
        %1227 = vmatmul.bf16.gmra.mxu0 %v1214
        %v1228 = vpop.f32.mrf.mxu0
        %v1229 = vadd.f32 0.0, %v1228
        %v1230 = vpop.f32.mrf.mxu0
        %1231 = vdwg.mxu0
        %v1232 = vmul.f32 %v1229, 0.5
        %1233 = vset.pattern.permute.xlu0 1
        %1234 = vperm.xlu0 %1233, %v1094
        %v1235 = vpop.permute.xlu0 %1234
        %v1237 = vmul.f32 %v1063, %v1235
        %v1238 = vadd.f32 %v1232, %v1237
        %v1239 = vsel %vm1170, %v1238, -inf
        %1240 = vmax.xlane.f32.xlu0 %v1239
        %v1241 = vpop.xlane.xlu0 %1240
        %v1242 = vsub.f32 %v1238, %v1241
        %v1243 = vmul.f32 %v1242, 1.442695
        %v1244 = vpow.pop %v1243
        %v1245 = vsel %vm1170, %v1244, 0.0
        %1246 = vadd.xlane.f32.xlu0 %v1245
        %v1247 = vpop.xlane.xlu0 %1246
        %v1248 = vrcp.pop %v1247
        %v1249 = vmul.f32 %v1244, %v1248
        %v1250 = vpack.c.bf16 %v1249, %v1249
        %1251 = vrot.lane.b32.xlu0 %v1187, 124
        %v1252 = vpop.permute.xlu0 %1251
        %v1255 = vsel %vm1170, %v1250, 0
        %1257 = vmatpush.bf16.msra.mxu0 0
        %1258 = vmatpush.bf16.msra.mxu0 0
        %1259 = vmatpush.bf16.msra.mxu0 0
        %1260 = vmatpush.bf16.msra.mxu0 0
        %1261 = vmatpush.bf16.msra.mxu0 0
        %1262 = vmatpush.bf16.msra.mxu0 0
        %1263 = vmatpush.bf16.msra.mxu0 0
        %1264 = vmatpush.bf16.msra.mxu0 %v1252
        %1265 = vmatmul.bf16.gmra.mxu0 %v1255
        %v1266 = vpop.f32.mrf.mxu0
        %v1267 = vadd.f32 0.0, %v1266
        %v1268 = vpop.f32.mrf.mxu0
        %1269 = vdwg.mxu0
        %1271 = vrot.lane.b32.xlu0 %v1267, 4
        %v1272 = vpop.permute.xlu0 %1271
        %vm1274 = vcmask 64544
        %1275 = vst.msk [vmem:[#allocation2] sm:$0xff] %vm1274, %v1272
        %1276 = vrot.lane.b32.xlu0 %v1208, 120
        %v1277 = vpop.permute.xlu0 %1276
        %1278 = vrot.lane.b32.xlu0 %v1141, 120
        %v1279 = vpop.permute.xlu0 %1278
        %v1281 = vsel %vm1142, %v1277, 0
        %v1284 = vsel %vm1142, %v1279, 0
        %1286 = vmatpush.bf16.xpose.msra.mxu0 0
        %1287 = vmatpush.bf16.xpose.msra.mxu0 0
        %1288 = vmatpush.bf16.xpose.msra.mxu0 0
        %1289 = vmatpush.bf16.xpose.msra.mxu0 0
        %1290 = vmatpush.bf16.xpose.msra.mxu0 0
        %1291 = vmatpush.bf16.xpose.msra.mxu0 0
        %1292 = vmatpush.bf16.xpose.msra.mxu0 0
        %1293 = vmatpush.bf16.xpose.msra.mxu0 %v1284
        %1294 = vmatmul.bf16.gmra.mxu0 %v1281
        %v1295 = vpop.f32.mrf.mxu0
        %v1296 = vadd.f32 0.0, %v1295
        %v1297 = vpop.f32.mrf.mxu0
        %1298 = vdwg.mxu0
        %v1299 = vmul.f32 %v1296, 0.5
        %1300 = vset.pattern.permute.xlu0 2
        %1301 = vperm.xlu0 %1300, %v1094
        %v1302 = vpop.permute.xlu0 %1301
        %v1304 = vmul.f32 %v1063, %v1302
        %v1305 = vadd.f32 %v1299, %v1304
        %v1306 = vsel %vm1170, %v1305, -inf
        %1307 = vmax.xlane.f32.xlu0 %v1306
        %v1308 = vpop.xlane.xlu0 %1307
        %v1309 = vsub.f32 %v1305, %v1308
        %v1310 = vmul.f32 %v1309, 1.442695
        %v1311 = vpow.pop %v1310
        %v1312 = vsel %vm1170, %v1311, 0.0
        %1313 = vadd.xlane.f32.xlu0 %v1312
        %v1314 = vpop.xlane.xlu0 %1313
        %v1315 = vrcp.pop %v1314
        %v1316 = vmul.f32 %v1311, %v1315
        %v1317 = vpack.c.bf16 %v1316, %v1316
        %1318 = vrot.lane.b32.xlu0 %v1187, 120
        %v1319 = vpop.permute.xlu0 %1318
        %v1322 = vsel %vm1170, %v1317, 0
        %1324 = vmatpush.bf16.msra.mxu0 0
        %1325 = vmatpush.bf16.msra.mxu0 0
        %1326 = vmatpush.bf16.msra.mxu0 0
        %1327 = vmatpush.bf16.msra.mxu0 0
        %1328 = vmatpush.bf16.msra.mxu0 0
        %1329 = vmatpush.bf16.msra.mxu0 0
        %1330 = vmatpush.bf16.msra.mxu0 0
        %1331 = vmatpush.bf16.msra.mxu0 %v1319
        %1332 = vmatmul.bf16.gmra.mxu0 %v1322
        %v1333 = vpop.f32.mrf.mxu0
        %v1334 = vadd.f32 0.0, %v1333
        %v1335 = vpop.f32.mrf.mxu0
        %1336 = vdwg.mxu0
        %1338 = vrot.lane.b32.xlu0 %v1334, 8
        %v1339 = vpop.permute.xlu0 %1338
        %vm1341 = vcmask 97344
        %1342 = vst.msk [vmem:[#allocation2] sm:$0xff] %vm1341, %v1339
        %1343 = vrot.lane.b32.xlu0 %v1208, 116
        %v1344 = vpop.permute.xlu0 %1343
        %1345 = vrot.lane.b32.xlu0 %v1141, 116
        %v1346 = vpop.permute.xlu0 %1345
        %v1348 = vsel %vm1142, %v1344, 0
        %v1351 = vsel %vm1142, %v1346, 0
        %1353 = vmatpush.bf16.xpose.msra.mxu0 0
        %1354 = vmatpush.bf16.xpose.msra.mxu0 0
        %1355 = vmatpush.bf16.xpose.msra.mxu0 0
        %1356 = vmatpush.bf16.xpose.msra.mxu0 0
        %1357 = vmatpush.bf16.xpose.msra.mxu0 0
        %1358 = vmatpush.bf16.xpose.msra.mxu0 0
        %1359 = vmatpush.bf16.xpose.msra.mxu0 0
        %1360 = vmatpush.bf16.xpose.msra.mxu0 %v1351
        %1361 = vmatmul.bf16.gmra.mxu0 %v1348
        %v1362 = vpop.f32.mrf.mxu0
        %v1363 = vadd.f32 0.0, %v1362
        %v1364 = vpop.f32.mrf.mxu0
        %1365 = vdwg.mxu0
        %v1366 = vmul.f32 %v1363, 0.5
        %1367 = vset.pattern.permute.xlu0 3
        %1368 = vperm.xlu0 %1367, %v1094
        %v1369 = vpop.permute.xlu0 %1368
        %v1371 = vmul.f32 %v1063, %v1369
        %v1372 = vadd.f32 %v1366, %v1371
        %v1373 = vsel %vm1170, %v1372, -inf
        %1374 = vmax.xlane.f32.xlu0 %v1373
        %v1375 = vpop.xlane.xlu0 %1374
        %v1376 = vsub.f32 %v1372, %v1375
        %v1377 = vmul.f32 %v1376, 1.442695
        %v1378 = vpow.pop %v1377
        %v1379 = vsel %vm1170, %v1378, 0.0
        %1380 = vadd.xlane.f32.xlu0 %v1379
        %v1381 = vpop.xlane.xlu0 %1380
        %v1382 = vrcp.pop %v1381
        %v1383 = vmul.f32 %v1378, %v1382
        %v1384 = vpack.c.bf16 %v1383, %v1383
        %1385 = vrot.lane.b32.xlu0 %v1187, 116
        %v1386 = vpop.permute.xlu0 %1385
        %v1389 = vsel %vm1170, %v1384, 0
        %1391 = vmatpush.bf16.msra.mxu0 0
        %1392 = vmatpush.bf16.msra.mxu0 0
        %1393 = vmatpush.bf16.msra.mxu0 0
        %1394 = vmatpush.bf16.msra.mxu0 0
        %1395 = vmatpush.bf16.msra.mxu0 0
        %1396 = vmatpush.bf16.msra.mxu0 0
        %1397 = vmatpush.bf16.msra.mxu0 0
        %1398 = vmatpush.bf16.msra.mxu0 %v1386
        %1399 = vmatmul.bf16.gmra.mxu0 %v1389
        %v1400 = vpop.f32.mrf.mxu0
        %v1401 = vadd.f32 0.0, %v1400
        %v1402 = vpop.f32.mrf.mxu0
        %1403 = vdwg.mxu0
        %1405 = vrot.lane.b32.xlu0 %v1401, 12
        %v1406 = vpop.permute.xlu0 %1405
        %vm1408 = vcmask 130144
        %1409 = vst.msk [vmem:[#allocation2] sm:$0xff] %vm1408, %v1406
        %1410 = vrot.lane.b32.xlu0 %v1208, 112
        %v1411 = vpop.permute.xlu0 %1410
        %1412 = vrot.lane.b32.xlu0 %v1141, 112
        %v1413 = vpop.permute.xlu0 %1412
        %v1415 = vsel %vm1142, %v1411, 0
        %v1418 = vsel %vm1142, %v1413, 0
        %1420 = vmatpush.bf16.xpose.msra.mxu0 0
        %1421 = vmatpush.bf16.xpose.msra.mxu0 0
        %1422 = vmatpush.bf16.xpose.msra.mxu0 0
        %1423 = vmatpush.bf16.xpose.msra.mxu0 0
        %1424 = vmatpush.bf16.xpose.msra.mxu0 0
        %1425 = vmatpush.bf16.xpose.msra.mxu0 0
        %1426 = vmatpush.bf16.xpose.msra.mxu0 0
        %1427 = vmatpush.bf16.xpose.msra.mxu0 %v1418
        %1428 = vmatmul.bf16.gmra.mxu0 %v1415
        %v1429 = vpop.f32.mrf.mxu0
        %v1430 = vadd.f32 0.0, %v1429
        %v1431 = vpop.f32.mrf.mxu0
        %1432 = vdwg.mxu0
        %v1433 = vmul.f32 %v1430, 0.5
        %1434 = vset.pattern.permute.xlu0 4
        %1435 = vperm.xlu0 %1434, %v1094
        %v1436 = vpop.permute.xlu0 %1435
        %v1438 = vmul.f32 %v1063, %v1436
        %v1439 = vadd.f32 %v1433, %v1438
        %v1440 = vsel %vm1170, %v1439, -inf
        %1441 = vmax.xlane.f32.xlu0 %v1440
        %v1442 = vpop.xlane.xlu0 %1441
        %v1443 = vsub.f32 %v1439, %v1442
        %v1444 = vmul.f32 %v1443, 1.442695
        %v1445 = vpow.pop %v1444
        %v1446 = vsel %vm1170, %v1445, 0.0
        %1447 = vadd.xlane.f32.xlu0 %v1446
        %v1448 = vpop.xlane.xlu0 %1447
        %v1449 = vrcp.pop %v1448
        %v1450 = vmul.f32 %v1445, %v1449
        %v1451 = vpack.c.bf16 %v1450, %v1450
        %1452 = vrot.lane.b32.xlu0 %v1187, 112
        %v1453 = vpop.permute.xlu0 %1452
        %v1456 = vsel %vm1170, %v1451, 0
        %1458 = vmatpush.bf16.msra.mxu0 0
        %1459 = vmatpush.bf16.msra.mxu0 0
        %1460 = vmatpush.bf16.msra.mxu0 0
        %1461 = vmatpush.bf16.msra.mxu0 0
        %1462 = vmatpush.bf16.msra.mxu0 0
        %1463 = vmatpush.bf16.msra.mxu0 0
        %1464 = vmatpush.bf16.msra.mxu0 0
        %1465 = vmatpush.bf16.msra.mxu0 %v1453
        %1466 = vmatmul.bf16.gmra.mxu0 %v1456
        %v1467 = vpop.f32.mrf.mxu0
        %v1468 = vadd.f32 0.0, %v1467
        %v1469 = vpop.f32.mrf.mxu0
        %1470 = vdwg.mxu0
        %1472 = vrot.lane.b32.xlu0 %v1468, 16
        %v1473 = vpop.permute.xlu0 %1472
        %vm1475 = vcmask 162944
        %1476 = vst.msk [vmem:[#allocation2] sm:$0xff] %vm1475, %v1473
        %1477 = vrot.lane.b32.xlu0 %v1208, 108
        %v1478 = vpop.permute.xlu0 %1477
        %1479 = vrot.lane.b32.xlu0 %v1141, 108
        %v1480 = vpop.permute.xlu0 %1479
        %v1482 = vsel %vm1142, %v1478, 0
        %v1485 = vsel %vm1142, %v1480, 0
        %1487 = vmatpush.bf16.xpose.msra.mxu0 0
        %1488 = vmatpush.bf16.xpose.msra.mxu0 0
        %1489 = vmatpush.bf16.xpose.msra.mxu0 0
        %1490 = vmatpush.bf16.xpose.msra.mxu0 0
        %1491 = vmatpush.bf16.xpose.msra.mxu0 0
        %1492 = vmatpush.bf16.xpose.msra.mxu0 0
        %1493 = vmatpush.bf16.xpose.msra.mxu0 0
        %1494 = vmatpush.bf16.xpose.msra.mxu0 %v1485
        %1495 = vmatmul.bf16.gmra.mxu0 %v1482
        %v1496 = vpop.f32.mrf.mxu0
        %v1497 = vadd.f32 0.0, %v1496
        %v1498 = vpop.f32.mrf.mxu0
        %1499 = vdwg.mxu0
        %v1500 = vmul.f32 %v1497, 0.5
        %1501 = vset.pattern.permute.xlu0 5
        %1502 = vperm.xlu0 %1501, %v1094
        %v1503 = vpop.permute.xlu0 %1502
        %v1505 = vmul.f32 %v1063, %v1503
        %v1506 = vadd.f32 %v1500, %v1505
        %v1507 = vsel %vm1170, %v1506, -inf
        %1508 = vmax.xlane.f32.xlu0 %v1507
        %v1509 = vpop.xlane.xlu0 %1508
        %v1510 = vsub.f32 %v1506, %v1509
        %v1511 = vmul.f32 %v1510, 1.442695
        %v1512 = vpow.pop %v1511
        %v1513 = vsel %vm1170, %v1512, 0.0
        %1514 = vadd.xlane.f32.xlu0 %v1513
        %v1515 = vpop.xlane.xlu0 %1514
        %v1516 = vrcp.pop %v1515
        %v1517 = vmul.f32 %v1512, %v1516
        %v1518 = vpack.c.bf16 %v1517, %v1517
        %1519 = vrot.lane.b32.xlu0 %v1187, 108
        %v1520 = vpop.permute.xlu0 %1519
        %v1523 = vsel %vm1170, %v1518, 0
        %1525 = vmatpush.bf16.msra.mxu0 0
        %1526 = vmatpush.bf16.msra.mxu0 0
        %1527 = vmatpush.bf16.msra.mxu0 0
        %1528 = vmatpush.bf16.msra.mxu0 0
        %1529 = vmatpush.bf16.msra.mxu0 0
        %1530 = vmatpush.bf16.msra.mxu0 0
        %1531 = vmatpush.bf16.msra.mxu0 0
        %1532 = vmatpush.bf16.msra.mxu0 %v1520
        %1533 = vmatmul.bf16.gmra.mxu0 %v1523
        %v1534 = vpop.f32.mrf.mxu0
        %v1535 = vadd.f32 0.0, %v1534
        %v1536 = vpop.f32.mrf.mxu0
        %1537 = vdwg.mxu0
        %1539 = vrot.lane.b32.xlu0 %v1535, 20
        %v1540 = vpop.permute.xlu0 %1539
        %vm1542 = vcmask 195744
        %1543 = vst.msk [vmem:[#allocation2] sm:$0xff] %vm1542, %v1540
        %1544 = vrot.lane.b32.xlu0 %v1208, 104
        %v1545 = vpop.permute.xlu0 %1544
        %1546 = vrot.lane.b32.xlu0 %v1141, 104
        %v1547 = vpop.permute.xlu0 %1546
        %v1549 = vsel %vm1142, %v1545, 0
        %v1552 = vsel %vm1142, %v1547, 0
        %1554 = vmatpush.bf16.xpose.msra.mxu0 0
        %1555 = vmatpush.bf16.xpose.msra.mxu0 0
        %1556 = vmatpush.bf16.xpose.msra.mxu0 0
        %1557 = vmatpush.bf16.xpose.msra.mxu0 0
        %1558 = vmatpush.bf16.xpose.msra.mxu0 0
        %1559 = vmatpush.bf16.xpose.msra.mxu0 0
        %1560 = vmatpush.bf16.xpose.msra.mxu0 0
        %1561 = vmatpush.bf16.xpose.msra.mxu0 %v1552
        %1562 = vmatmul.bf16.gmra.mxu0 %v1549
        %v1563 = vpop.f32.mrf.mxu0
        %v1564 = vadd.f32 0.0, %v1563
        %v1565 = vpop.f32.mrf.mxu0
        %1566 = vdwg.mxu0
        %v1567 = vmul.f32 %v1564, 0.5
        %1568 = vset.pattern.permute.xlu0 6
        %1569 = vperm.xlu0 %1568, %v1094
        %v1570 = vpop.permute.xlu0 %1569
        %v1572 = vmul.f32 %v1063, %v1570
        %v1573 = vadd.f32 %v1567, %v1572
        %v1574 = vsel %vm1170, %v1573, -inf
        %1575 = vmax.xlane.f32.xlu0 %v1574
        %v1576 = vpop.xlane.xlu0 %1575
        %v1577 = vsub.f32 %v1573, %v1576
        %v1578 = vmul.f32 %v1577, 1.442695
        %v1579 = vpow.pop %v1578
        %v1580 = vsel %vm1170, %v1579, 0.0
        %1581 = vadd.xlane.f32.xlu0 %v1580
        %v1582 = vpop.xlane.xlu0 %1581
        %v1583 = vrcp.pop %v1582
        %v1584 = vmul.f32 %v1579, %v1583
        %v1585 = vpack.c.bf16 %v1584, %v1584
        %1586 = vrot.lane.b32.xlu0 %v1187, 104
        %v1587 = vpop.permute.xlu0 %1586
        %v1590 = vsel %vm1170, %v1585, 0
        %1592 = vmatpush.bf16.msra.mxu0 0
        %1593 = vmatpush.bf16.msra.mxu0 0
        %1594 = vmatpush.bf16.msra.mxu0 0
        %1595 = vmatpush.bf16.msra.mxu0 0
        %1596 = vmatpush.bf16.msra.mxu0 0
        %1597 = vmatpush.bf16.msra.mxu0 0
        %1598 = vmatpush.bf16.msra.mxu0 0
        %1599 = vmatpush.bf16.msra.mxu0 %v1587
        %1600 = vmatmul.bf16.gmra.mxu0 %v1590
        %v1601 = vpop.f32.mrf.mxu0
        %v1602 = vadd.f32 0.0, %v1601
        %v1603 = vpop.f32.mrf.mxu0
        %1604 = vdwg.mxu0
        %1606 = vrot.lane.b32.xlu0 %v1602, 24
        %v1607 = vpop.permute.xlu0 %1606
        %vm1609 = vcmask 228544
        %1610 = vst.msk [vmem:[#allocation2] sm:$0xff] %vm1609, %v1607
        %1611 = vrot.lane.b32.xlu0 %v1208, 100
        %v1612 = vpop.permute.xlu0 %1611
        %1613 = vrot.lane.b32.xlu0 %v1141, 100
        %v1614 = vpop.permute.xlu0 %1613
        %v1616 = vsel %vm1142, %v1612, 0
        %v1619 = vsel %vm1142, %v1614, 0
        %1621 = vmatpush.bf16.xpose.msra.mxu0 0
        %1622 = vmatpush.bf16.xpose.msra.mxu0 0
        %1623 = vmatpush.bf16.xpose.msra.mxu0 0
        %1624 = vmatpush.bf16.xpose.msra.mxu0 0
        %1625 = vmatpush.bf16.xpose.msra.mxu0 0
        %1626 = vmatpush.bf16.xpose.msra.mxu0 0
        %1627 = vmatpush.bf16.xpose.msra.mxu0 0
        %1628 = vmatpush.bf16.xpose.msra.mxu0 %v1619
        %1629 = vmatmul.bf16.gmra.mxu0 %v1616
        %v1630 = vpop.f32.mrf.mxu0
        %v1631 = vadd.f32 0.0, %v1630
        %v1632 = vpop.f32.mrf.mxu0
        %1633 = vdwg.mxu0
        %v1634 = vmul.f32 %v1631, 0.5
        %1635 = vset.pattern.permute.xlu0 7
        %1636 = vperm.xlu0 %1635, %v1094
        %v1637 = vpop.permute.xlu0 %1636
        %v1639 = vmul.f32 %v1063, %v1637
        %v1640 = vadd.f32 %v1634, %v1639
        %v1641 = vsel %vm1170, %v1640, -inf
        %1642 = vmax.xlane.f32.xlu0 %v1641
        %v1643 = vpop.xlane.xlu0 %1642
        %v1644 = vsub.f32 %v1640, %v1643
        %v1645 = vmul.f32 %v1644, 1.442695
        %v1646 = vpow.pop %v1645
        %v1647 = vsel %vm1170, %v1646, 0.0
        %1648 = vadd.xlane.f32.xlu0 %v1647
        %v1649 = vpop.xlane.xlu0 %1648
        %v1650 = vrcp.pop %v1649
        %v1651 = vmul.f32 %v1646, %v1650
        %v1652 = vpack.c.bf16 %v1651, %v1651
        %1653 = vrot.lane.b32.xlu0 %v1187, 100
        %v1654 = vpop.permute.xlu0 %1653
        %v1657 = vsel %vm1170, %v1652, 0
        %1659 = vmatpush.bf16.msra.mxu0 0
        %1660 = vmatpush.bf16.msra.mxu0 0
        %1661 = vmatpush.bf16.msra.mxu0 0
        %1662 = vmatpush.bf16.msra.mxu0 0
        %1663 = vmatpush.bf16.msra.mxu0 0
        %1664 = vmatpush.bf16.msra.mxu0 0
        %1665 = vmatpush.bf16.msra.mxu0 0
        %1666 = vmatpush.bf16.msra.mxu0 %v1654
        %1667 = vmatmul.bf16.gmra.mxu0 %v1657
        %v1668 = vpop.f32.mrf.mxu0
        %v1669 = vadd.f32 0.0, %v1668
        %v1670 = vpop.f32.mrf.mxu0
        %1671 = vdwg.mxu0
        %1673 = vrot.lane.b32.xlu0 %v1669, 28
        %v1674 = vpop.permute.xlu0 %1673
        %vm1676 = vcmask 261344
        %1677 = vst.msk [vmem:[#allocation2] sm:$0xff] %vm1676, %v1674
        %v1678 = vld [vmem:[#allocation2] sm:$0xff]
        %v1679 = vpack.c.bf16 %v1678, %v1678
        %v1680 = vld [vmem:[#allocation16] sm:$0xf]
        %v1681 = vld [vmem:[#allocation16 + $0x4] sm:$0xf]
        %v1682 = vld [vmem:[#allocation16 + $0x8] sm:$0xf]
        %v1683 = vld [vmem:[#allocation16 + $0xc] sm:$0xf]
        %v1684 = vld [vmem:[%s12] sm:$0x1]
        %v1686 = vperm.slane %v1684, 0
        %v1692 = vunpack.c.l.b16 %v1680
        %v1693 = vunpack.c.l.b16 %v1681
        %v1694 = vunpack.c.l.b16 %v1682
        %v1695 = vunpack.c.l.b16 %v1683
        %v1696 = vpack.c.b16 %v1693, %v1692
        %v1697 = vpack.c.b16 %v1695, %v1694
        %v1701 = vsel %vm1072, %v1679, 0
        %1703 = vmatpush.bf16.msra.mxu0 0
        %1704 = vmatpush.bf16.msra.mxu0 0
        %1705 = vmatpush.bf16.msra.mxu0 0
        %1706 = vmatpush.bf16.msra.mxu0 0
        %1707 = vmatpush.bf16.msra.mxu0 0
        %1708 = vmatpush.bf16.msra.mxu0 0
        %1709 = vmatpush.bf16.msra.mxu0 %v1697
        %1710 = vmatpush.bf16.msra.mxu0 %v1696
        %1711 = vmatmul.bf16.gmra.mxu0 %v1701
        %v1712 = vpop.f32.mrf.mxu0
        %v1713 = vadd.f32 %v1686, %v1712
        %v1714 = vpop.f32.mrf.mxu0
        %1715 = vdwg.mxu0
        %v1716 = vadd.f32 %v1059, %v1713
        %v1717 = vsel %vm1072, %v1716, 0.0
        %1718 = vadd.xlane.f32.xlu0 %v1717
        %v1719 = vpop.xlane.xlu0 %1718
        %v1720 = vrcp.pop 32.0
        %v1721 = vmul.f32 32.0, %v1720
        %v1722 = vsub.f32 1.0, %v1721
        %v1723 = vmul.f32 %v1720, %v1722
        %v1724 = vadd.f32 %v1720, %v1723
        %vm1725 = vweird.f32 %v1720
        %v1726 = vsel %vm1725, %v1720, %v1724
        %v1727 = vmul.f32 %v1719, %v1726
        %v1728 = vsub.f32 %v1716, %v1727
        %v1729 = vmul.f32 %v1728, %v1728
        %v1730 = vsel %vm1072, %v1729, 0.0
        %1731 = vadd.xlane.f32.xlu0 %v1730
        %v1732 = vpop.xlane.xlu0 %1731
        %v1733 = vmul.f32 %v1732, %v1726
        %v1734 = vadd.f32 %v1733, 1e-05
        %v1735 = vrsqrt.pop %v1734
        %v1736 = vmul.f32 %v1735, %v1734
        %v1737 = vmul.f32 %v1736, %v1735
        %v1738 = vmul.f32 0.5, %v1737
        %v1739 = vsub.f32 1.5, %v1738
        %v1740 = vmul.f32 %v1735, %v1739
        %vm1741 = vweird.f32 %v1734
        %vm1742 = vweird.f32 %v1735
        %vm1743 = vmor %vm1741, %vm1742
        %v1744 = vsel %vm1743, %v1735, %v1740
        %v1745 = vmul.f32 %v1728, %v1744
        %v1746 = vld [vmem:[%s15] sm:$0x1]
        %v1748 = vperm.slane %v1746, 0
        %v1750 = vmul.f32 %v1745, %v1748
        %v1751 = vld [vmem:[%s16] sm:$0x1]
        %v1753 = vperm.slane %v1751, 0
        %v1755 = vadd.f32 %v1750, %v1753
        %v1756 = vpack.c.bf16 %v1755, %v1755
        %v1757 = vld [vmem:[#allocation17] sm:$0xf]
        %v1758 = vld [vmem:[#allocation17 + $0x4] sm:$0xf]
        %v1759 = vld [vmem:[#allocation17 + $0x8] sm:$0xf]
        %v1760 = vld [vmem:[#allocation17 + $0xc] sm:$0xf]
        %v1761 = vld [vmem:[%s18] sm:$0x1]
        %v1763 = vperm.slane %v1761, 0
        %v1769 = vunpack.c.l.b16 %v1757
        %v1770 = vunpack.c.l.b16 %v1758
        %v1771 = vunpack.c.l.b16 %v1759
        %v1772 = vunpack.c.l.b16 %v1760
        %v1773 = vpack.c.b16 %v1770, %v1769
        %v1774 = vpack.c.b16 %v1772, %v1771
        %v1778 = vsel %vm1072, %v1756, 0
        %1780 = vmatpush.bf16.msra.mxu0 0
        %1781 = vmatpush.bf16.msra.mxu0 0
        %1782 = vmatpush.bf16.msra.mxu0 0
        %1783 = vmatpush.bf16.msra.mxu0 0
        %1784 = vmatpush.bf16.msra.mxu0 0
        %1785 = vmatpush.bf16.msra.mxu0 0
        %1786 = vmatpush.bf16.msra.mxu0 %v1774
        %1787 = vmatpush.bf16.msra.mxu0 %v1773
        %1788 = vmatmul.bf16.gmra.mxu0 %v1778
        %v1789 = vpop.f32.mrf.mxu0
        %v1790 = vadd.f32 %v1763, %v1789
        %v1791 = vpop.f32.mrf.mxu0
        %1792 = vdwg.mxu0
        %v1793 = vmax.f32 %v1790, 0.0
        %v1794 = vpack.c.bf16 %v1793, %v1793
        %v1795 = vld [vmem:[%s19] sm:$0xf]
        %v1796 = vld [vmem:[%s19 + $0x4] sm:$0xf]
        %v1797 = vld [vmem:[%s19 + $0x8] sm:$0xf]
        %v1798 = vld [vmem:[%s19 + $0xc] sm:$0xf]
        %v1799 = vld [vmem:[%s19 + $0x10] sm:$0xf]
        %v1800 = vld [vmem:[%s19 + $0x14] sm:$0xf]
        %v1801 = vld [vmem:[%s19 + $0x18] sm:$0xf]
        %v1802 = vld [vmem:[%s19 + $0x1c] sm:$0xf]
        %v1803 = vld [vmem:[%s20] sm:$0x1]
        %v1805 = vperm.slane %v1803, 0
        %v1815 = vunpack.c.l.b16 %v1795
        %v1816 = vunpack.c.l.b16 %v1796
        %v1817 = vunpack.c.l.b16 %v1797
        %v1818 = vunpack.c.l.b16 %v1798
        %v1819 = vunpack.c.l.b16 %v1799
        %v1820 = vunpack.c.l.b16 %v1800
        %v1821 = vunpack.c.l.b16 %v1801
        %v1822 = vunpack.c.l.b16 %v1802
        %v1823 = vpack.c.b16 %v1816, %v1815
        %v1824 = vpack.c.b16 %v1818, %v1817
        %v1825 = vpack.c.b16 %v1820, %v1819
        %v1826 = vpack.c.b16 %v1822, %v1821
        %vm1831 = vcmask 523264
        %v1833 = vsel %vm1831, %v1794, 0
        %1835 = vmatpush.bf16.msra.mxu0 0
        %1836 = vmatpush.bf16.msra.mxu0 0
        %1837 = vmatpush.bf16.msra.mxu0 0
        %1838 = vmatpush.bf16.msra.mxu0 0
        %1839 = vmatpush.bf16.msra.mxu0 %v1826
        %1840 = vmatpush.bf16.msra.mxu0 %v1825
        %1841 = vmatpush.bf16.msra.mxu0 %v1824
        %1842 = vmatpush.bf16.msra.mxu0 %v1823
        %1843 = vmatmul.bf16.gmra.mxu0 %v1833
        %v1844 = vpop.f32.mrf.mxu0
        %v1845 = vadd.f32 %v1805, %v1844
        %v1846 = vpop.f32.mrf.mxu0
        %1847 = vdwg.mxu0
        %v1848 = vadd.f32 %v1755, %v1845
        %v1849 = vsel %vm1072, %v1848, 0.0
        %1850 = vadd.xlane.f32.xlu0 %v1849
        %v1851 = vpop.xlane.xlu0 %1850
        %v1852 = vmul.f32 %v1851, %v1726
        %v1853 = vsub.f32 %v1848, %v1852
        %v1854 = vmul.f32 %v1853, %v1853
        %v1855 = vsel %vm1072, %v1854, 0.0
        %1856 = vadd.xlane.f32.xlu0 %v1855
        %v1857 = vpop.xlane.xlu0 %1856
        %v1858 = vmul.f32 %v1857, %v1726
        %v1859 = vadd.f32 %v1858, 1e-05
        %v1860 = vrsqrt.pop %v1859
        %v1861 = vmul.f32 %v1860, %v1859
        %v1862 = vmul.f32 %v1861, %v1860
        %v1863 = vmul.f32 0.5, %v1862
        %v1864 = vsub.f32 1.5, %v1863
        %v1865 = vmul.f32 %v1860, %v1864
        %vm1866 = vweird.f32 %v1859
        %vm1867 = vweird.f32 %v1860
        %vm1868 = vmor %vm1866, %vm1867
        %v1869 = vsel %vm1868, %v1860, %v1865
        %v1870 = vmul.f32 %v1853, %v1869
        %v1871 = vld [vmem:[%s21] sm:$0x1]
        %v1873 = vperm.slane %v1871, 0
        %v1875 = vmul.f32 %v1870, %v1873
        %v1876 = vld [vmem:[%s22] sm:$0x1]
        %v1878 = vperm.slane %v1876, 0
        %v1880 = vadd.f32 %v1875, %v1878
        %1881 = vst.msk [vmem:[%s948] sm:$0xff] %vm1072, %v1880
        %s1882 = sand.u32 %s582, 1
        %s1883 = scalar_lea.sflag [#allocation7], %s1882
        %s1884 = sand.u32 %s582, 1
        %s1885 = smul.addr %s1884, 8
        %s1886 = scalar_lea.vmem [#allocation19], %s1885
        // Predicated region
        $region149: #{tpu_custom_call.1} parent=111 // pred_check
          %p1887 = pneg %p592
        $region150: #{tpu_custom_call.1} parent=111 // pred_check_branch
          %1889 = sbr.rel (%p1887) target = $region152
        $region151: #{tpu_custom_call.1} parent=111 // pred_region
          %1891 = vsyncadd %s1883, 0
          %s1892 = smul.addr %s50, 2
          %s1893 = sadd.s32 %s51, %s1892
          %s1894 = smul.addr %s1893, 8
          %s1895 = scalar_lea.hbm %s23, %s1894
          %s1897 = sshll.u32 %s1886, 4
          %s1898 = int_to_ptr.vmem [resolvable:$true] %s1897
          %s1899 = sshll.u32 %s1895, 4
          %s1900 = int_to_ptr.hbm [resolvable:$true] %s1899
          %1902 = dma.vmem_to_hbm [thread:$0]  %s1898, 128, %s1900, %s1883
        $region152: #{tpu_custom_call.1} parent=111 // pred_fallthru
          _
      $region112: #{tpu_custom_call.1} parent=5 // pred_fallthru
        _
      %p1903 = scmp.le.s32.totalorder 2, %s41
      // Predicated region
      $region153: #{tpu_custom_call.1} parent=5 // pred_check
        %p1904 = pneg %p1903
      $region154: #{tpu_custom_call.1} parent=5 // pred_check_branch
        %1906 = sbr.rel (%p1904) target = $region156
      $region155: #{tpu_custom_call.1} parent=5 // pred_region
        %s1907 = ssub.s32 %s41, 2
        // Predicated region
        $region157: #{tpu_custom_call.1} parent=155 // pred_check
          %p1908 = pneg %p598
        $region158: #{tpu_custom_call.1} parent=155 // pred_check_branch
          %1910 = sbr.rel (%p1908) target = $region160
        $region159: #{tpu_custom_call.1} parent=155 // pred_region
          %s1911 = sand.u32 %s583, 1
          %s1912 = scalar_lea.sflag [#allocation7], %s1911
          %s1913 = sand.u32 %s583, 1
          %s1914 = smul.addr %s1913, 8
          %s1915 = scalar_lea.vmem [#allocation19], %s1914
          %1917 = dma.done %s1912, 128
        $region160: #{tpu_custom_call.1} parent=155 // pred_fallthru
          _
      $region156: #{tpu_custom_call.1} parent=5 // pred_fallthru
        _
    $region6: #{tpu_custom_call.1} parent=1 // loop_footer
      %s45 = sadd.s32 1, %s41
    $region7: #{tpu_custom_call.1} parent=1 // loop_footer_branch
      %40 = sbr.rel target = $region3
    $region8: #{tpu_custom_call.1} parent=1 // loop_exit
      _
    %1918 = vsyncpa [#allocation6], 1
    %s1919 = scalar_lea.sflag [#allocation6], 1
    %1920 = vsyncpa %s1919, 1
    %1921 = vsyncpa [#allocation9], 1
    %s1922 = scalar_lea.sflag [#allocation9], 1
    %1923 = vsyncpa %s1922, 1
    %1924 = vsyncpa [#allocation12], 1
    %1925 = vsyncpa [#allocation15], 1
    %1926 = vsyncpa [#allocation18], 1
    %1927 = vsyncpa [#allocation7], 1
    %s1928 = scalar_lea.sflag [#allocation7], 1
    %1929 = vsyncpa %s1928, 1

</llo_original>
